<compile_context>
chip_gen: v7x
topology: tpu7x:2x2x1
jax: 0.10.0
libtpu: 0.0.40
codegen_flags: <defaults>
</compile_context>

<pallas_src>
import functools

import jax
import jax.numpy as jnp
from jax.experimental import pallas as pl
from jax.experimental.pallas import tpu as pltpu


def _round_up(n, m):
    return ((n + m - 1) // m) * m


# --------------------------------------------------------------------------- #
# Fused kernel: all layers in one body, activations stay on-chip.
# --------------------------------------------------------------------------- #
def _mlp_fused_kernel(*refs, dims, n_layers):
    """refs = (x_ref, w_ref[0..n_layers-1], bias_ref, o_ref).

    x_ref:   (TILE_B, Din_pad)   bf16
    w_ref_i: (din_pad_i, dout_pad_i) bf16  (BN already folded in, zero-padded)
    bias_ref:(8, max_width)      f32   (row i = padded bias of layer i)
    o_ref:   (TILE_B, dims[-1])  f32   (lane-dense padded output)
    """
    x_ref = refs[0]
    w_refs = refs[1:1 + n_layers]
    b_ref = refs[1 + n_layers]
    o_ref = refs[2 + n_layers]

    bvals = b_ref[...]          # read the packed bias slab once (8 x max_width f32)
    h = x_ref[...]              # bf16 activations

    for li in range(n_layers):
        # MXU matmul: bf16 x bf16 -> f32 accumulate.
        y = jnp.dot(h, w_refs[li][...], preferred_element_type=jnp.float32)
        y = y + bvals[li:li + 1, :dims[li]]          # f32 bias add (broadcast)
        if li < n_layers - 1:
            y = jnp.maximum(y, 0.0)                  # HEActivation -> ReLU (see TODO)
            h = y.astype(jnp.bfloat16)               # bf16 operand for next matmul
        else:
            o_ref[...] = y.astype(o_ref.dtype)       # final layer: no activation


# --------------------------------------------------------------------------- #
# Parameter construction (matches shapes of the PyTorch module) + BN fold + pad.
# --------------------------------------------------------------------------- #
def init_params(key, input_size, num_classes, hidden_dims=(256, 128, 64, 32)):
    """Deterministic synthetic parameters (Linear + eval-mode BatchNorm1d stats)."""
    params = {"hidden": [], "cls": []}
    dims = [input_size] + list(hidden_dims)
    for i in range(len(hidden_dims)):
        key, k1, k2, k3, k4, k5, k6 = jax.random.split(key, 7)
        din, dout = dims[i], dims[i + 1]
        w = jax.random.normal(k1, (din, dout), jnp.float32) * (1.0 / jnp.sqrt(din))
        b = jax.random.normal(k2, (dout,), jnp.float32) * 0.01
        gamma = 1.0 + 0.1 * jax.random.normal(k3, (dout,), jnp.float32)
        beta = 0.1 * jax.random.normal(k4, (dout,), jnp.float32)
        running_mean = 0.1 * jax.random.normal(k5, (dout,), jnp.float32)
        running_var = jnp.abs(1.0 + 0.1 * jax.random.normal(k6, (dout,), jnp.float32))
        eps = 1e-5
        bn_scale = gamma / jnp.sqrt(running_var + eps)
        bn_shift = beta - running_mean * bn_scale
        params["hidden"].append((w, b, bn_scale, bn_shift))

    key, k1, k2, k3, k4 = jax.random.split(key, 5)
    w1 = jax.random.normal(k1, (hidden_dims[-1], 64), jnp.float32) * (1.0 / jnp.sqrt(hidden_dims[-1]))
    b1 = jax.random.normal(k2, (64,), jnp.float32) * 0.01
    w2 = jax.random.normal(k3, (64, num_classes), jnp.float32) * (1.0 / 8.0)
    b2 = jax.random.normal(k4, (num_classes,), jnp.float32) * 0.01
    params["cls"] = [(w1, b1), (w2, b2)]
    return params


def fold_and_pad_params(params, input_size, num_classes):
    """Fold each layer's post-activation BN affine into the NEXT linear layer
    (exact, since ReLU sits between matmul and BN), then zero-pad all widths to
    multiples of 128 lanes and cast the matmul operands to bf16."""
    # ---- fold (in plain f32, unpadded) ----
    layers_f32 = []           # list of (W, b) ; ReLU after all but the last
    s_prev, t_prev = None, None
    for (w, b, s, t) in params["hidden"]:
        if s_prev is not None:
            b = t_prev @ w + b            # uses the ORIGINAL w
            w = s_prev[:, None] * w
        layers_f32.append((w, b))
        s_prev, t_prev = s, t
    (w1, b1), (w2, b2) = params["cls"]
    b1 = t_prev @ w1 + b1                 # last hidden BN folds into classifier linear 1
    w1 = s_prev[:, None] * w1
    layers_f32.append((w1, b1))
    layers_f32.append((w2, b2))           # final linear: no activation, no BN after

    # ---- pad to lane-dense (multiples of 128) and cast weights to bf16 ----
    din_pad = _round_up(input_size, 128)
    ws, biases, dims = [], [], []
    in_pad = din_pad
    for (w, b) in layers_f32:
        dout = w.shape[1]
        dout_pad = max(_round_up(dout, 128), 128)
        wp = jnp.zeros((in_pad, dout_pad), jnp.float32).at[:w.shape[0], :dout].set(w)
        bp = jnp.zeros((dout_pad,), jnp.float32).at[:dout].set(b)
        ws.append(wp.astype(jnp.bfloat16))
        biases.append(bp)
        dims.append(dout_pad)
        in_pad = dout_pad

    max_w = max(dims)
    bias = jnp.zeros((8, max_w), jnp.float32)          # single packed bias operand
    for i, bp in enumerate(biases):
        bias = bias.at[i, :bp.shape[0]].set(bp)

    return {
        "ws": ws, "bias": bias, "dims": tuple(dims), "din_pad": din_pad,
        "num_classes": num_classes, "layers_f32": layers_f32,
    }


# --------------------------------------------------------------------------- #
# Forward pass: one pallas_call for the whole MLP, batch-tiled grid.
# --------------------------------------------------------------------------- #
def mlp_forward(x, folded):
    ws, bias, dims = folded["ws"], folded["bias"], folded["dims"]
    din_pad, num_classes = folded["din_pad"], folded["num_classes"]
    n_layers = len(ws)

    B = x.shape[0]
    h = x.reshape(B, -1).astype(jnp.float32)
    din = h.shape[1]
    if din < din_pad:
        h = jnp.pad(h, ((0, 0), (0, din_pad - din)))

    # Batch tiling: multiples of 256 fill the v6e/v7x MXU; tiny batches pad to 8.
    TILE_B = 256 if B >= 256 else _round_up(max(B, 1), 8)
    B_pad = _round_up(B, TILE_B)
    if B_pad != B:
        h = jnp.pad(h, ((0, B_pad - B), (0, 0)))
    num_tiles = B_pad // TILE_B

    in_specs = [pl.BlockSpec((TILE_B, din_pad), lambda i: (i, 0))]
    for w in ws:
        in_specs.append(pl.BlockSpec(w.shape, lambda i: (0, 0)))       # VMEM-resident weights
    in_specs.append(pl.BlockSpec(bias.shape, lambda i: (0, 0)))        # packed biases

    kernel = functools.partial(_mlp_fused_kernel, dims=dims, n_layers=n_layers)

    out_pad = pl.pallas_call(
        kernel,
        out_shape=jax.ShapeDtypeStruct((B_pad, dims[-1]), jnp.float32),
        grid=(num_tiles,),
        in_specs=in_specs,
        out_specs=pl.BlockSpec((TILE_B, dims[-1]), lambda i: (i, 0)),
        compiler_params=pltpu.CompilerParams(dimension_semantics=("parallel",)),
    )(h.astype(jnp.bfloat16), *ws, bias)

    return out_pad[:B, :num_classes]


# --------------------------------------------------------------------------- #
# References for correctness checks.
# --------------------------------------------------------------------------- #
def mlp_forward_ref_f32(x, params):
    """Plain-JAX f32 reference of the ORIGINAL (unfolded) module semantics."""
    B = x.shape[0]
    h = x.reshape(B, -1).astype(jnp.float32)
    for (w, b, s, t) in params["hidden"]:
        h = jnp.maximum(h @ w + b, 0.0) * s + t
    (w1, b1), (w2, b2) = params["cls"]
    h = jnp.maximum(h @ w1 + b1, 0.0)
    return h @ w2 + b2


def mlp_forward_folded_f32(x, layers_f32):
    """f32 forward using the BN-folded (unpadded) weights -- checks the fold algebra."""
    B = x.shape[0]
    h = x.reshape(B, -1).astype(jnp.float32)
    n = len(layers_f32)
    for li, (w, b) in enumerate(layers_f32):
        h = h @ w + b
        if li < n - 1:
            h = jnp.maximum(h, 0.0)
    return h


def mlp_forward_ref_bf16(x, folded):
    """Plain-JAX reference with the SAME bf16 casts / padding as the kernel."""
    ws, bias, dims = folded["ws"], folded["bias"], folded["dims"]
    din_pad, num_classes = folded["din_pad"], folded["num_classes"]
    B = x.shape[0]
    h = x.reshape(B, -1).astype(jnp.float32)
    if h.shape[1] < din_pad:
        h = jnp.pad(h, ((0, 0), (0, din_pad - h.shape[1])))
    h = h.astype(jnp.bfloat16)
    n = len(ws)
    for li, w in enumerate(ws):
        y = jnp.dot(h, w, preferred_element_type=jnp.float32)
        y = y + bias[li, :dims[li]]
        if li < n - 1:
            h = jnp.maximum(y, 0.0).astype(jnp.bfloat16)
        else:
            h = y
    return h[:, :num_classes]


if __name__ == "__main__":
    key = jax.random.PRNGKey(0)
    kx, kp = jax.random.split(key)

    # (B=2, C=4, H=16, W=16) -> x.view(B, -1) gives input_size = 1024
    x = jax.random.normal(kx, (2, 4, 16, 16), jnp.float32)
    input_size = 4 * 16 * 16
    num_classes = 10

    params = init_params(kp, input_size, num_classes)
    folded = fold_and_pad_params(params, input_size, num_classes)

    # 1) BN-fold algebra is exact (pure f32, no padding / bf16 involved).
    ref_f32 = mlp_forward_ref_f32(x, params)
    fold_f32 = mlp_forward_folded_f32(x, folded["layers_f32"])
    assert jnp.allclose(fold_f32, ref_f32, atol=1e-3, rtol=1e-3), "BN fold mismatch"

    # 2) Fused Pallas kernel vs bf16-matched JAX reference (small batch path).
    out = jax.block_until_ready(mlp_forward(x, folded))
    assert out.shape == (2, num_classes), out.shape
    ref_bf16 = mlp_forward_ref_bf16(x, folded)
    assert jnp.allclose(out, ref_bf16, atol=2e-2, rtol=2e-2), "kernel mismatch vs reference"

    # 3) Tiled / multi-program path (exercises the batch grid + parallel semantics).
    xb = jax.random.normal(kx, (512, 4, 16, 16), jnp.float32)
    outb = jax.block_until_ready(mlp_forward(xb, folded))
    refb = mlp_forward_ref_bf16(xb, folded)
    assert outb.shape == (512, num_classes), outb.shape
    assert jnp.allclose(outb, refb, atol=2e-2, rtol=2e-2), "tiled kernel mismatch vs reference"

    print("KERNEL_OK")
</pallas_src>

<mosaic_0001>
module attributes {stable_mosaic.version = 11 : i64} {
  func.func @_mlp_fused_kernel(%arg0: i32, %arg1: memref<8x1024xbf16, #tpu.memory_space<vmem>>, %arg2: memref<1024x256xbf16, #tpu.memory_space<vmem>>, %arg3: memref<256x128xbf16, #tpu.memory_space<vmem>>, %arg4: memref<128x128xbf16, #tpu.memory_space<vmem>>, %arg5: memref<128x128xbf16, #tpu.memory_space<vmem>>, %arg6: memref<128x128xbf16, #tpu.memory_space<vmem>>, %arg7: memref<128x128xbf16, #tpu.memory_space<vmem>>, %arg8: memref<8x256xf32, #tpu.memory_space<vmem>>, %arg9: memref<8x128xf32, #tpu.memory_space<vmem>>) attributes {dimension_semantics = [#tpu.dimension_semantics<parallel>], iteration_bounds = array<i64: 1>, scalar_prefetch = 0 : i64, scratch_operands = 0 : i64, tpu.core_type = #tpu.core_type<tc>, window_params = [{transform_indices = @transform_0, window_bounds = array<i64: 8, 1024>}, {pipeline_mode = #tpu.pipeline_mode<synchronous>, transform_indices = @transform_1, window_bounds = array<i64: 1024, 256>}, {pipeline_mode = #tpu.pipeline_mode<synchronous>, transform_indices = @transform_2, window_bounds = array<i64: 256, 128>}, {pipeline_mode = #tpu.pipeline_mode<synchronous>, transform_indices = @transform_3, window_bounds = array<i64: 128, 128>}, {pipeline_mode = #tpu.pipeline_mode<synchronous>, transform_indices = @transform_4, window_bounds = array<i64: 128, 128>}, {pipeline_mode = #tpu.pipeline_mode<synchronous>, transform_indices = @transform_5, window_bounds = array<i64: 128, 128>}, {pipeline_mode = #tpu.pipeline_mode<synchronous>, transform_indices = @transform_6, window_bounds = array<i64: 128, 128>}, {pipeline_mode = #tpu.pipeline_mode<synchronous>, transform_indices = @transform_7, window_bounds = array<i64: 8, 256>}, {transform_indices = @transform_8, window_bounds = array<i64: 8, 128>}]} {
    %c0 = arith.constant 0 : index
    %c0_0 = arith.constant 0 : index
    %0 = vector.load %arg8[%c0, %c0_0] : memref<8x256xf32, #tpu.memory_space<vmem>>, vector<8x256xf32>
    %c0_1 = arith.constant 0 : index
    %c0_2 = arith.constant 0 : index
    %1 = vector.load %arg1[%c0_1, %c0_2] : memref<8x1024xbf16, #tpu.memory_space<vmem>>, vector<8x1024xbf16>
    %c0_3 = arith.constant 0 : index
    %c0_4 = arith.constant 0 : index
    %2 = vector.load %arg2[%c0_3, %c0_4] : memref<1024x256xbf16, #tpu.memory_space<vmem>>, vector<1024x256xbf16>
    %cst = arith.constant dense<0.000000e+00> : vector<8x256xf32>
    %3 = tpu.matmul %1, %2, %cst {dimension_numbers = #tpu.dot_dimension_numbers<[1], [0], [0], [1], [0, 0, 1, 1], [], []>} : vector<8x1024xbf16>, vector<1024x256xbf16>, vector<8x256xf32> -> vector<8x256xf32>
    %4 = vector.extract_strided_slice %0 {offsets = [0, 0], sizes = [1, 256], strides = [1, 1]} : vector<8x256xf32> to vector<1x256xf32>
    %5 = vector.broadcast %4 : vector<1x256xf32> to vector<8x256xf32>
    %6 = arith.addf %3, %5 : vector<8x256xf32>
    %cst_5 = arith.constant 0.000000e+00 : f32
    %7 = vector.broadcast %cst_5 : f32 to vector<8x256xf32>
    %8 = arith.maximumf %6, %7 : vector<8x256xf32>
    %9 = arith.truncf %8 : vector<8x256xf32> to vector<8x256xbf16>
    %c0_6 = arith.constant 0 : index
    %c0_7 = arith.constant 0 : index
    %10 = vector.load %arg3[%c0_6, %c0_7] : memref<256x128xbf16, #tpu.memory_space<vmem>>, vector<256x128xbf16>
    %cst_8 = arith.constant dense<0.000000e+00> : vector<8x128xf32>
    %11 = tpu.matmul %9, %10, %cst_8 {dimension_numbers = #tpu.dot_dimension_numbers<[1], [0], [0], [1], [0, 0, 1, 1], [], []>} : vector<8x256xbf16>, vector<256x128xbf16>, vector<8x128xf32> -> vector<8x128xf32>
    %12 = vector.extract_strided_slice %0 {offsets = [1, 0], sizes = [1, 128], strides = [1, 1]} : vector<8x256xf32> to vector<1x128xf32>
    %13 = vector.broadcast %12 : vector<1x128xf32> to vector<8x128xf32>
    %14 = arith.addf %11, %13 : vector<8x128xf32>
    %cst_9 = arith.constant 0.000000e+00 : f32
    %15 = vector.broadcast %cst_9 : f32 to vector<8x128xf32>
    %16 = arith.maximumf %14, %15 : vector<8x128xf32>
    %17 = arith.truncf %16 : vector<8x128xf32> to vector<8x128xbf16>
    %c0_10 = arith.constant 0 : index
    %c0_11 = arith.constant 0 : index
    %18 = vector.load %arg4[%c0_10, %c0_11] : memref<128x128xbf16, #tpu.memory_space<vmem>>, vector<128x128xbf16>
    %cst_12 = arith.constant dense<0.000000e+00> : vector<8x128xf32>
    %19 = tpu.matmul %17, %18, %cst_12 {dimension_numbers = #tpu.dot_dimension_numbers<[1], [0], [0], [1], [0, 0, 1, 1], [], []>} : vector<8x128xbf16>, vector<128x128xbf16>, vector<8x128xf32> -> vector<8x128xf32>
    %20 = vector.extract_strided_slice %0 {offsets = [2, 0], sizes = [1, 128], strides = [1, 1]} : vector<8x256xf32> to vector<1x128xf32>
    %21 = vector.broadcast %20 : vector<1x128xf32> to vector<8x128xf32>
    %22 = arith.addf %19, %21 : vector<8x128xf32>
    %cst_13 = arith.constant 0.000000e+00 : f32
    %23 = vector.broadcast %cst_13 : f32 to vector<8x128xf32>
    %24 = arith.maximumf %22, %23 : vector<8x128xf32>
    %25 = arith.truncf %24 : vector<8x128xf32> to vector<8x128xbf16>
    %c0_14 = arith.constant 0 : index
    %c0_15 = arith.constant 0 : index
    %26 = vector.load %arg5[%c0_14, %c0_15] : memref<128x128xbf16, #tpu.memory_space<vmem>>, vector<128x128xbf16>
    %cst_16 = arith.constant dense<0.000000e+00> : vector<8x128xf32>
    %27 = tpu.matmul %25, %26, %cst_16 {dimension_numbers = #tpu.dot_dimension_numbers<[1], [0], [0], [1], [0, 0, 1, 1], [], []>} : vector<8x128xbf16>, vector<128x128xbf16>, vector<8x128xf32> -> vector<8x128xf32>
    %28 = vector.extract_strided_slice %0 {offsets = [3, 0], sizes = [1, 128], strides = [1, 1]} : vector<8x256xf32> to vector<1x128xf32>
    %29 = vector.broadcast %28 : vector<1x128xf32> to vector<8x128xf32>
    %30 = arith.addf %27, %29 : vector<8x128xf32>
    %cst_17 = arith.constant 0.000000e+00 : f32
    %31 = vector.broadcast %cst_17 : f32 to vector<8x128xf32>
    %32 = arith.maximumf %30, %31 : vector<8x128xf32>
    %33 = arith.truncf %32 : vector<8x128xf32> to vector<8x128xbf16>
    %c0_18 = arith.constant 0 : index
    %c0_19 = arith.constant 0 : index
    %34 = vector.load %arg6[%c0_18, %c0_19] : memref<128x128xbf16, #tpu.memory_space<vmem>>, vector<128x128xbf16>
    %cst_20 = arith.constant dense<0.000000e+00> : vector<8x128xf32>
    %35 = tpu.matmul %33, %34, %cst_20 {dimension_numbers = #tpu.dot_dimension_numbers<[1], [0], [0], [1], [0, 0, 1, 1], [], []>} : vector<8x128xbf16>, vector<128x128xbf16>, vector<8x128xf32> -> vector<8x128xf32>
    %36 = vector.extract_strided_slice %0 {offsets = [4, 0], sizes = [1, 128], strides = [1, 1]} : vector<8x256xf32> to vector<1x128xf32>
    %37 = vector.broadcast %36 : vector<1x128xf32> to vector<8x128xf32>
    %38 = arith.addf %35, %37 : vector<8x128xf32>
    %cst_21 = arith.constant 0.000000e+00 : f32
    %39 = vector.broadcast %cst_21 : f32 to vector<8x128xf32>
    %40 = arith.maximumf %38, %39 : vector<8x128xf32>
    %41 = arith.truncf %40 : vector<8x128xf32> to vector<8x128xbf16>
    %c0_22 = arith.constant 0 : index
    %c0_23 = arith.constant 0 : index
    %42 = vector.load %arg7[%c0_22, %c0_23] : memref<128x128xbf16, #tpu.memory_space<vmem>>, vector<128x128xbf16>
    %cst_24 = arith.constant dense<0.000000e+00> : vector<8x128xf32>
    %43 = tpu.matmul %41, %42, %cst_24 {dimension_numbers = #tpu.dot_dimension_numbers<[1], [0], [0], [1], [0, 0, 1, 1], [], []>} : vector<8x128xbf16>, vector<128x128xbf16>, vector<8x128xf32> -> vector<8x128xf32>
    %44 = vector.extract_strided_slice %0 {offsets = [5, 0], sizes = [1, 128], strides = [1, 1]} : vector<8x256xf32> to vector<1x128xf32>
    %45 = vector.broadcast %44 : vector<1x128xf32> to vector<8x128xf32>
    %46 = arith.addf %43, %45 : vector<8x128xf32>
    %c0_25 = arith.constant 0 : index
    %c0_26 = arith.constant 0 : index
    %47 = vector.load %arg9[%c0_25, %c0_26] : memref<8x128xf32, #tpu.memory_space<vmem>>, vector<8x128xf32>
    tpu.vector_store %arg9[%c0_25, %c0_26], %46 {strides = array<i32>} : memref<8x128xf32, #tpu.memory_space<vmem>>, vector<8x128xf32>,
    return
  }
  func.func @transform_0(%arg0: i32) -> (i32, i32) {
    %c0_i32 = arith.constant 0 : i32
    %c0_i32_0 = arith.constant 0 : i32
    return %arg0, %c0_i32 : i32, i32
  }
  func.func @transform_1(%arg0: i32) -> (i32, i32) {
    %c0_i32 = arith.constant 0 : i32
    %c0_i32_0 = arith.constant 0 : i32
    %c0_i32_1 = arith.constant 0 : i32
    return %c0_i32, %c0_i32_0 : i32, i32
  }
  func.func @transform_2(%arg0: i32) -> (i32, i32) {
    %c0_i32 = arith.constant 0 : i32
    %c0_i32_0 = arith.constant 0 : i32
    %c0_i32_1 = arith.constant 0 : i32
    return %c0_i32, %c0_i32_0 : i32, i32
  }
  func.func @transform_3(%arg0: i32) -> (i32, i32) {
    %c0_i32 = arith.constant 0 : i32
    %c0_i32_0 = arith.constant 0 : i32
    %c0_i32_1 = arith.constant 0 : i32
    return %c0_i32, %c0_i32_0 : i32, i32
  }
  func.func @transform_4(%arg0: i32) -> (i32, i32) {
    %c0_i32 = arith.constant 0 : i32
    %c0_i32_0 = arith.constant 0 : i32
    %c0_i32_1 = arith.constant 0 : i32
    return %c0_i32, %c0_i32_0 : i32, i32
  }
  func.func @transform_5(%arg0: i32) -> (i32, i32) {
    %c0_i32 = arith.constant 0 : i32
    %c0_i32_0 = arith.constant 0 : i32
    %c0_i32_1 = arith.constant 0 : i32
    return %c0_i32, %c0_i32_0 : i32, i32
  }
  func.func @transform_6(%arg0: i32) -> (i32, i32) {
    %c0_i32 = arith.constant 0 : i32
    %c0_i32_0 = arith.constant 0 : i32
    %c0_i32_1 = arith.constant 0 : i32
    return %c0_i32, %c0_i32_0 : i32, i32
  }
  func.func @transform_7(%arg0: i32) -> (i32, i32) {
    %c0_i32 = arith.constant 0 : i32
    %c0_i32_0 = arith.constant 0 : i32
    %c0_i32_1 = arith.constant 0 : i32
    return %c0_i32, %c0_i32_0 : i32, i32
  }
  func.func @transform_8(%arg0: i32) -> (i32, i32) {
    %c0_i32 = arith.constant 0 : i32
    %c0_i32_0 = arith.constant 0 : i32
    return %arg0, %c0_i32 : i32, i32
  }
}

</mosaic_0001>

<llo_original>
// kernel: tpu_custom_call.1
$region0: #{tpu_custom_call.1}
  #allocation0 [shape = 'u32[]', space=smem, size = 0x4, offset = 0x4, fixed_abs, tag = 'smem constant byte address 0x4 - core index']
  #allocation1 [shape = 'u32[144,128]{1,0:T(1,128)}', space=vmem, size = 0x12000, scoped, tag = 'internal scratch']
  %s0 = inlined_call_operand.hbm [shape: bf16[8,1024], index: 0, kind: input, shape index: {}]
  %s1 = inlined_call_operand.hbm [shape: bf16[1024,256], index: 1, kind: input, shape index: {}]
  %s2 = inlined_call_operand.hbm [shape: bf16[256,128], index: 2, kind: input, shape index: {}]
  %s3 = inlined_call_operand.hbm [shape: bf16[128,128], index: 3, kind: input, shape index: {}]
  %s4 = inlined_call_operand.hbm [shape: bf16[128,128], index: 4, kind: input, shape index: {}]
  %s5 = inlined_call_operand.hbm [shape: bf16[128,128], index: 5, kind: input, shape index: {}]
  %s6 = inlined_call_operand.hbm [shape: bf16[128,128], index: 6, kind: input, shape index: {}]
  %s7 = inlined_call_operand.vmem [shape: f32[8,256], index: 7, kind: input, shape index: {}]
  %s8 = inlined_call_operand.hbm [shape: f32[8,128], index: 8, kind: output, shape index: {}]
  %s9 = sld [smem:[#allocation0]]
  $region70: #{tpu_custom_call.1} parent=0
    _
  %s11 = ssub.s32 1, %s9
  %s12 = scalar_select 0, %s11, %s9
  $region1: #{tpu_custom_call.1} parent=0
    #allocation2 [shape = 'u8[16384]{0}', space=vmem, size = 0x4000, scoped, tag = 'input window, operand 0, single buffered']
    #allocation3 [shape = 's32[1]{0}', space=sflag, size = 0x4, scoped, tag = 'scoped memory for tpu_custom_call.1']
    #allocation4 [shape = 's32[1]{0}', space=sflag, size = 0x4, scoped, tag = 'scoped memory for tpu_custom_call.1']
    #allocation5 [shape = 'u8[524288]{0}', space=vmem, size = 0x80000, scoped, tag = 'input window, operand 1, single buffered']
    #allocation6 [shape = 's32[1]{0}', space=sflag, size = 0x4, scoped, tag = 'scoped memory for tpu_custom_call.1']
    #allocation7 [shape = 'u8[65536]{0}', space=vmem, size = 0x10000, scoped, tag = 'input window, operand 2, single buffered']
    #allocation8 [shape = 'u8[32768]{0}', space=vmem, size = 0x8000, scoped, tag = 'input window, operand 3, single buffered']
    #allocation9 [shape = 's32[1]{0}', space=sflag, size = 0x4, scoped, tag = 'scoped memory for tpu_custom_call.1']
    #allocation10 [shape = 'u8[32768]{0}', space=vmem, size = 0x8000, scoped, tag = 'input window, operand 4, single buffered']
    #allocation11 [shape = 'u8[32768]{0}', space=vmem, size = 0x8000, scoped, tag = 'input window, operand 5, single buffered']
    #allocation12 [shape = 's32[1]{0}', space=sflag, size = 0x4, scoped, tag = 'scoped memory for tpu_custom_call.1']
    #allocation13 [shape = 'u8[32768]{0}', space=vmem, size = 0x8000, scoped, tag = 'input window, operand 6, single buffered']
    #allocation14 [shape = 'u8[4096]{0}', space=vmem, size = 0x1000, scoped, tag = 'output window, operand 0, single buffered']
    %13 = vsyncpa [#allocation3], 0
    %14 = vsyncpa [#allocation6], 0
    %15 = vsyncpa [#allocation9], 0
    %16 = vsyncpa [#allocation12], 0
    %17 = vsyncpa [#allocation4], 0
    // Predicated region
    $region2: #{tpu_custom_call.1} parent=1 // pred_check
      _
    $region3: #{tpu_custom_call.1} parent=1 // pred_check_branch
      %19 = sbr.rel (0) target = $region5
    $region4: #{tpu_custom_call.1} parent=1 // pred_region
      %s21 = ssub.s32 512, 512
      %22 = vsyncadd [#allocation3], %s21
      %s24 = sshll.u32 [#allocation2], 4
      %s25 = int_to_ptr.vmem [resolvable:$true] %s24
      %27 = dma.hbm_to_vmem [thread:$0]  %s0, 512, %s25, [#allocation3]
    $region5: #{tpu_custom_call.1} parent=1 // pred_fallthru
      _
    // Predicated region
    $region6: #{tpu_custom_call.1} parent=1 // pred_check
      _
    $region7: #{tpu_custom_call.1} parent=1 // pred_check_branch
      %29 = sbr.rel (0) target = $region9
    $region8: #{tpu_custom_call.1} parent=1 // pred_region
      %s31 = ssub.s32 16384, 16384
      %32 = vsyncadd [#allocation6], %s31
      %s33 = sshll.u32 [#allocation5], 4
      %s34 = int_to_ptr.vmem [resolvable:$true] %s33
      %39 = dma.hbm_to_vmem [thread:$0]  %s1, 16384, %s34, [#allocation6], 128, 128, 8
    $region9: #{tpu_custom_call.1} parent=1 // pred_fallthru
      _
    // Predicated region
    $region10: #{tpu_custom_call.1} parent=1 // pred_check
      _
    $region11: #{tpu_custom_call.1} parent=1 // pred_check_branch
      %41 = sbr.rel (0) target = $region13
    $region12: #{tpu_custom_call.1} parent=1 // pred_region
      %s43 = ssub.s32 2048, 2048
      %44 = vsyncadd [#allocation6], %s43
      %s45 = sshll.u32 [#allocation7], 4
      %s46 = int_to_ptr.vmem [resolvable:$true] %s45
      %51 = dma.hbm_to_vmem [thread:$0]  %s2, 2048, %s46, [#allocation6], 64, 64, 4
    $region13: #{tpu_custom_call.1} parent=1 // pred_fallthru
      _
    // Predicated region
    $region14: #{tpu_custom_call.1} parent=1 // pred_check
      _
    $region15: #{tpu_custom_call.1} parent=1 // pred_check_branch
      %53 = sbr.rel (0) target = $region17
    $region16: #{tpu_custom_call.1} parent=1 // pred_region
      %s55 = ssub.s32 1024, 1024
      %56 = vsyncadd [#allocation9], %s55
      %s57 = sshll.u32 [#allocation8], 4
      %s58 = int_to_ptr.vmem [resolvable:$true] %s57
      %63 = dma.hbm_to_vmem [thread:$0]  %s3, 1024, %s58, [#allocation9], 64, 64, 4
    $region17: #{tpu_custom_call.1} parent=1 // pred_fallthru
      _
    // Predicated region
    $region18: #{tpu_custom_call.1} parent=1 // pred_check
      _
    $region19: #{tpu_custom_call.1} parent=1 // pred_check_branch
      %65 = sbr.rel (0) target = $region21
    $region20: #{tpu_custom_call.1} parent=1 // pred_region
      %s67 = ssub.s32 1024, 1024
      %68 = vsyncadd [#allocation9], %s67
      %s69 = sshll.u32 [#allocation10], 4
      %s70 = int_to_ptr.vmem [resolvable:$true] %s69
      %75 = dma.hbm_to_vmem [thread:$0]  %s4, 1024, %s70, [#allocation9], 64, 64, 4
    $region21: #{tpu_custom_call.1} parent=1 // pred_fallthru
      _
    // Predicated region
    $region22: #{tpu_custom_call.1} parent=1 // pred_check
      _
    $region23: #{tpu_custom_call.1} parent=1 // pred_check_branch
      %77 = sbr.rel (0) target = $region25
    $region24: #{tpu_custom_call.1} parent=1 // pred_region
      %s79 = ssub.s32 1024, 1024
      %80 = vsyncadd [#allocation12], %s79
      %s81 = sshll.u32 [#allocation11], 4
      %s82 = int_to_ptr.vmem [resolvable:$true] %s81
      %87 = dma.hbm_to_vmem [thread:$0]  %s5, 1024, %s82, [#allocation12], 64, 64, 4
    $region25: #{tpu_custom_call.1} parent=1 // pred_fallthru
      _
    // Predicated region
    $region26: #{tpu_custom_call.1} parent=1 // pred_check
      _
    $region27: #{tpu_custom_call.1} parent=1 // pred_check_branch
      %89 = sbr.rel (0) target = $region29
    $region28: #{tpu_custom_call.1} parent=1 // pred_region
      %s91 = ssub.s32 1024, 1024
      %92 = vsyncadd [#allocation12], %s91
      %s93 = sshll.u32 [#allocation13], 4
      %s94 = int_to_ptr.vmem [resolvable:$true] %s93
      %99 = dma.hbm_to_vmem [thread:$0]  %s6, 1024, %s94, [#allocation12], 64, 64, 4
    $region29: #{tpu_custom_call.1} parent=1 // pred_fallthru
      _
    // Predicated region
    $region30: #{tpu_custom_call.1} parent=1 // pred_check
      _
    $region31: #{tpu_custom_call.1} parent=1 // pred_check_branch
      %101 = sbr.rel (0) target = $region33
    $region32: #{tpu_custom_call.1} parent=1 // pred_region
      _
    $region33: #{tpu_custom_call.1} parent=1 // pred_fallthru
      _
    // Predicated region
    $region34: #{tpu_custom_call.1} parent=1 // pred_check
      _
    $region35: #{tpu_custom_call.1} parent=1 // pred_check_branch
      %103 = sbr.rel (0) target = $region37
    $region36: #{tpu_custom_call.1} parent=1 // pred_region
      %104 = dma.done [#allocation3], 512
    $region37: #{tpu_custom_call.1} parent=1 // pred_fallthru
      _
    // Predicated region
    $region38: #{tpu_custom_call.1} parent=1 // pred_check
      _
    $region39: #{tpu_custom_call.1} parent=1 // pred_check_branch
      %106 = sbr.rel (0) target = $region41
    $region40: #{tpu_custom_call.1} parent=1 // pred_region
      %107 = dma.done [#allocation6], 16384
    $region41: #{tpu_custom_call.1} parent=1 // pred_fallthru
      _
    // Predicated region
    $region42: #{tpu_custom_call.1} parent=1 // pred_check
      _
    $region43: #{tpu_custom_call.1} parent=1 // pred_check_branch
      %109 = sbr.rel (0) target = $region45
    $region44: #{tpu_custom_call.1} parent=1 // pred_region
      %110 = dma.done [#allocation6], 2048
    $region45: #{tpu_custom_call.1} parent=1 // pred_fallthru
      _
    // Predicated region
    $region46: #{tpu_custom_call.1} parent=1 // pred_check
      _
    $region47: #{tpu_custom_call.1} parent=1 // pred_check_branch
      %112 = sbr.rel (0) target = $region49
    $region48: #{tpu_custom_call.1} parent=1 // pred_region
      %113 = dma.done [#allocation9], 1024
    $region49: #{tpu_custom_call.1} parent=1 // pred_fallthru
      _
    // Predicated region
    $region50: #{tpu_custom_call.1} parent=1 // pred_check
      _
    $region51: #{tpu_custom_call.1} parent=1 // pred_check_branch
      %115 = sbr.rel (0) target = $region53
    $region52: #{tpu_custom_call.1} parent=1 // pred_region
      %116 = dma.done [#allocation9], 1024
    $region53: #{tpu_custom_call.1} parent=1 // pred_fallthru
      _
    // Predicated region
    $region54: #{tpu_custom_call.1} parent=1 // pred_check
      _
    $region55: #{tpu_custom_call.1} parent=1 // pred_check_branch
      %118 = sbr.rel (0) target = $region57
    $region56: #{tpu_custom_call.1} parent=1 // pred_region
      %119 = dma.done [#allocation12], 1024
    $region57: #{tpu_custom_call.1} parent=1 // pred_fallthru
      _
    // Predicated region
    $region58: #{tpu_custom_call.1} parent=1 // pred_check
      _
    $region59: #{tpu_custom_call.1} parent=1 // pred_check_branch
      %121 = sbr.rel (0) target = $region61
    $region60: #{tpu_custom_call.1} parent=1 // pred_region
      %122 = dma.done [#allocation12], 1024
    $region61: #{tpu_custom_call.1} parent=1 // pred_fallthru
      _
    %v124 = vld [vmem:[%s7] sm:$0xff]
    %v125 = vld [vmem:[%s7 + $0x8] sm:$0xff]
    %v126 = vld [vmem:[#allocation2] sm:$0xff]
    %v127 = vld [vmem:[#allocation2 + $0x8] sm:$0xff]
    %v128 = vld [vmem:[#allocation2 + $0x10] sm:$0xff]
    %v129 = vld [vmem:[#allocation2 + $0x18] sm:$0xff]
    %v130 = vld [vmem:[#allocation5] sm:$0xff]
    %v131 = vld [vmem:[#allocation5 + $0x8] sm:$0xff]
    %v132 = vld [vmem:[#allocation5 + $0x10] sm:$0xff]
    %v133 = vld [vmem:[#allocation5 + $0x18] sm:$0xff]
    %v134 = vld [vmem:[#allocation5 + $0x20] sm:$0xff]
    %v135 = vld [vmem:[#allocation5 + $0x28] sm:$0xff]
    %v136 = vld [vmem:[#allocation5 + $0x30] sm:$0xff]
    %v137 = vld [vmem:[#allocation5 + $0x38] sm:$0xff]
    %v138 = vld [vmem:[#allocation5 + $0x40] sm:$0xff]
    %v139 = vld [vmem:[#allocation5 + $0x48] sm:$0xff]
    %v140 = vld [vmem:[#allocation5 + $0x50] sm:$0xff]
    %v141 = vld [vmem:[#allocation5 + $0x58] sm:$0xff]
    %v142 = vld [vmem:[#allocation5 + $0x60] sm:$0xff]
    %v143 = vld [vmem:[#allocation5 + $0x68] sm:$0xff]
    %v144 = vld [vmem:[#allocation5 + $0x70] sm:$0xff]
    %v145 = vld [vmem:[#allocation5 + $0x78] sm:$0xff]
    %v146 = vld [vmem:[#allocation5 + $0x80] sm:$0xff]
    %v147 = vld [vmem:[#allocation5 + $0x88] sm:$0xff]
    %v148 = vld [vmem:[#allocation5 + $0x90] sm:$0xff]
    %v149 = vld [vmem:[#allocation5 + $0x98] sm:$0xff]
    %v150 = vld [vmem:[#allocation5 + $0xa0] sm:$0xff]
    %v151 = vld [vmem:[#allocation5 + $0xa8] sm:$0xff]
    %v152 = vld [vmem:[#allocation5 + $0xb0] sm:$0xff]
    %v153 = vld [vmem:[#allocation5 + $0xb8] sm:$0xff]
    %v154 = vld [vmem:[#allocation5 + $0xc0] sm:$0xff]
    %v155 = vld [vmem:[#allocation5 + $0xc8] sm:$0xff]
    %v156 = vld [vmem:[#allocation5 + $0xd0] sm:$0xff]
    %v157 = vld [vmem:[#allocation5 + $0xd8] sm:$0xff]
    %v158 = vld [vmem:[#allocation5 + $0xe0] sm:$0xff]
    %v159 = vld [vmem:[#allocation5 + $0xe8] sm:$0xff]
    %v160 = vld [vmem:[#allocation5 + $0xf0] sm:$0xff]
    %v161 = vld [vmem:[#allocation5 + $0xf8] sm:$0xff]
    %v162 = vld [vmem:[#allocation5 + $0x100] sm:$0xff]
    %v163 = vld [vmem:[#allocation5 + $0x108] sm:$0xff]
    %v164 = vld [vmem:[#allocation5 + $0x110] sm:$0xff]
    %v165 = vld [vmem:[#allocation5 + $0x118] sm:$0xff]
    %v166 = vld [vmem:[#allocation5 + $0x120] sm:$0xff]
    %v167 = vld [vmem:[#allocation5 + $0x128] sm:$0xff]
    %v168 = vld [vmem:[#allocation5 + $0x130] sm:$0xff]
    %v169 = vld [vmem:[#allocation5 + $0x138] sm:$0xff]
    %v170 = vld [vmem:[#allocation5 + $0x140] sm:$0xff]
    %v171 = vld [vmem:[#allocation5 + $0x148] sm:$0xff]
    %v172 = vld [vmem:[#allocation5 + $0x150] sm:$0xff]
    %v173 = vld [vmem:[#allocation5 + $0x158] sm:$0xff]
    %v174 = vld [vmem:[#allocation5 + $0x160] sm:$0xff]
    %v175 = vld [vmem:[#allocation5 + $0x168] sm:$0xff]
    %v176 = vld [vmem:[#allocation5 + $0x170] sm:$0xff]
    %v177 = vld [vmem:[#allocation5 + $0x178] sm:$0xff]
    %v178 = vld [vmem:[#allocation5 + $0x180] sm:$0xff]
    %v179 = vld [vmem:[#allocation5 + $0x188] sm:$0xff]
    %v180 = vld [vmem:[#allocation5 + $0x190] sm:$0xff]
    %v181 = vld [vmem:[#allocation5 + $0x198] sm:$0xff]
    %v182 = vld [vmem:[#allocation5 + $0x1a0] sm:$0xff]
    %v183 = vld [vmem:[#allocation5 + $0x1a8] sm:$0xff]
    %v184 = vld [vmem:[#allocation5 + $0x1b0] sm:$0xff]
    %v185 = vld [vmem:[#allocation5 + $0x1b8] sm:$0xff]
    %v186 = vld [vmem:[#allocation5 + $0x1c0] sm:$0xff]
    %v187 = vld [vmem:[#allocation5 + $0x1c8] sm:$0xff]
    %v188 = vld [vmem:[#allocation5 + $0x1d0] sm:$0xff]
    %v189 = vld [vmem:[#allocation5 + $0x1d8] sm:$0xff]
    %v190 = vld [vmem:[#allocation5 + $0x1e0] sm:$0xff]
    %v191 = vld [vmem:[#allocation5 + $0x1e8] sm:$0xff]
    %v192 = vld [vmem:[#allocation5 + $0x1f0] sm:$0xff]
    %v193 = vld [vmem:[#allocation5 + $0x1f8] sm:$0xff]
    %v194 = vld [vmem:[#allocation5 + $0x200] sm:$0xff]
    %v195 = vld [vmem:[#allocation5 + $0x208] sm:$0xff]
    %v196 = vld [vmem:[#allocation5 + $0x210] sm:$0xff]
    %v197 = vld [vmem:[#allocation5 + $0x218] sm:$0xff]
    %v198 = vld [vmem:[#allocation5 + $0x220] sm:$0xff]
    %v199 = vld [vmem:[#allocation5 + $0x228] sm:$0xff]
    %v200 = vld [vmem:[#allocation5 + $0x230] sm:$0xff]
    %v201 = vld [vmem:[#allocation5 + $0x238] sm:$0xff]
    %v202 = vld [vmem:[#allocation5 + $0x240] sm:$0xff]
    %v203 = vld [vmem:[#allocation5 + $0x248] sm:$0xff]
    %v204 = vld [vmem:[#allocation5 + $0x250] sm:$0xff]
    %v205 = vld [vmem:[#allocation5 + $0x258] sm:$0xff]
    %v206 = vld [vmem:[#allocation5 + $0x260] sm:$0xff]
    %v207 = vld [vmem:[#allocation5 + $0x268] sm:$0xff]
    %v208 = vld [vmem:[#allocation5 + $0x270] sm:$0xff]
    %v209 = vld [vmem:[#allocation5 + $0x278] sm:$0xff]
    %v210 = vld [vmem:[#allocation5 + $0x280] sm:$0xff]
    %v211 = vld [vmem:[#allocation5 + $0x288] sm:$0xff]
    %v212 = vld [vmem:[#allocation5 + $0x290] sm:$0xff]
    %v213 = vld [vmem:[#allocation5 + $0x298] sm:$0xff]
    %v214 = vld [vmem:[#allocation5 + $0x2a0] sm:$0xff]
    %v215 = vld [vmem:[#allocation5 + $0x2a8] sm:$0xff]
    %v216 = vld [vmem:[#allocation5 + $0x2b0] sm:$0xff]
    %v217 = vld [vmem:[#allocation5 + $0x2b8] sm:$0xff]
    %v218 = vld [vmem:[#allocation5 + $0x2c0] sm:$0xff]
    %v219 = vld [vmem:[#allocation5 + $0x2c8] sm:$0xff]
    %v220 = vld [vmem:[#allocation5 + $0x2d0] sm:$0xff]
    %v221 = vld [vmem:[#allocation5 + $0x2d8] sm:$0xff]
    %v222 = vld [vmem:[#allocation5 + $0x2e0] sm:$0xff]
    %v223 = vld [vmem:[#allocation5 + $0x2e8] sm:$0xff]
    %v224 = vld [vmem:[#allocation5 + $0x2f0] sm:$0xff]
    %v225 = vld [vmem:[#allocation5 + $0x2f8] sm:$0xff]
    %v226 = vld [vmem:[#allocation5 + $0x300] sm:$0xff]
    %v227 = vld [vmem:[#allocation5 + $0x308] sm:$0xff]
    %v228 = vld [vmem:[#allocation5 + $0x310] sm:$0xff]
    %v229 = vld [vmem:[#allocation5 + $0x318] sm:$0xff]
    %v230 = vld [vmem:[#allocation5 + $0x320] sm:$0xff]
    %v231 = vld [vmem:[#allocation5 + $0x328] sm:$0xff]
    %v232 = vld [vmem:[#allocation5 + $0x330] sm:$0xff]
    %v233 = vld [vmem:[#allocation5 + $0x338] sm:$0xff]
    %v234 = vld [vmem:[#allocation5 + $0x340] sm:$0xff]
    %v235 = vld [vmem:[#allocation5 + $0x348] sm:$0xff]
    %v236 = vld [vmem:[#allocation5 + $0x350] sm:$0xff]
    %v237 = vld [vmem:[#allocation5 + $0x358] sm:$0xff]
    %v238 = vld [vmem:[#allocation5 + $0x360] sm:$0xff]
    %v239 = vld [vmem:[#allocation5 + $0x368] sm:$0xff]
    %v240 = vld [vmem:[#allocation5 + $0x370] sm:$0xff]
    %v241 = vld [vmem:[#allocation5 + $0x378] sm:$0xff]
    %v242 = vld [vmem:[#allocation5 + $0x380] sm:$0xff]
    %v243 = vld [vmem:[#allocation5 + $0x388] sm:$0xff]
    %v244 = vld [vmem:[#allocation5 + $0x390] sm:$0xff]
    %v245 = vld [vmem:[#allocation5 + $0x398] sm:$0xff]
    %v246 = vld [vmem:[#allocation5 + $0x3a0] sm:$0xff]
    %v247 = vld [vmem:[#allocation5 + $0x3a8] sm:$0xff]
    %v248 = vld [vmem:[#allocation5 + $0x3b0] sm:$0xff]
    %v249 = vld [vmem:[#allocation5 + $0x3b8] sm:$0xff]
    %v250 = vld [vmem:[#allocation5 + $0x3c0] sm:$0xff]
    %v251 = vld [vmem:[#allocation5 + $0x3c8] sm:$0xff]
    %v252 = vld [vmem:[#allocation5 + $0x3d0] sm:$0xff]
    %v253 = vld [vmem:[#allocation5 + $0x3d8] sm:$0xff]
    %v254 = vld [vmem:[#allocation5 + $0x3e0] sm:$0xff]
    %v255 = vld [vmem:[#allocation5 + $0x3e8] sm:$0xff]
    %v256 = vld [vmem:[#allocation5 + $0x3f0] sm:$0xff]
    %v257 = vld [vmem:[#allocation5 + $0x3f8] sm:$0xff]
    %v258 = vlaneseq
    %v259 = vshrl.u32 %v258, 7
    %v260 = vsub.s32 0, %v259
    %v261 = vrot.slane %v124, %v260
    %v262 = vlaneseq
    %v263 = vshrl.u32 %v262, 7
    %v264 = vsub.s32 0, %v263
    %v265 = vrot.slane %v125, %v264
    %v270 = vunpack.c.l.b16 %v126
    %v271 = vunpack.c.h.b16 %v126
    %v272 = vunpack.c.l.b16 %v127
    %v273 = vunpack.c.h.b16 %v127
    %v274 = vunpack.c.l.b16 %v128
    %v275 = vunpack.c.h.b16 %v128
    %v276 = vunpack.c.l.b16 %v129
    %v277 = vunpack.c.h.b16 %v129
    %v278 = vpack.c.b16 %v270, %v270
    %v279 = vpack.c.b16 %v271, %v271
    %v280 = vpack.c.b16 %v272, %v272
    %v281 = vpack.c.b16 %v273, %v273
    %v282 = vpack.c.b16 %v274, %v274
    %v283 = vpack.c.b16 %v275, %v275
    %v284 = vpack.c.b16 %v276, %v276
    %v285 = vpack.c.b16 %v277, %v277
    %v422 = vunpack.c.l.b16 %v130
    %v423 = vunpack.c.h.b16 %v130
    %v424 = vunpack.c.l.b16 %v131
    %v425 = vunpack.c.h.b16 %v131
    %v426 = vunpack.c.l.b16 %v132
    %v427 = vunpack.c.h.b16 %v132
    %v428 = vunpack.c.l.b16 %v133
    %v429 = vunpack.c.h.b16 %v133
    %v430 = vunpack.c.l.b16 %v134
    %v431 = vunpack.c.h.b16 %v134
    %v432 = vunpack.c.l.b16 %v135
    %v433 = vunpack.c.h.b16 %v135
    %v434 = vunpack.c.l.b16 %v136
    %v435 = vunpack.c.h.b16 %v136
    %v436 = vunpack.c.l.b16 %v137
    %v437 = vunpack.c.h.b16 %v137
    %v438 = vunpack.c.l.b16 %v138
    %v439 = vunpack.c.h.b16 %v138
    %v440 = vunpack.c.l.b16 %v139
    %v441 = vunpack.c.h.b16 %v139
    %v442 = vunpack.c.l.b16 %v140
    %v443 = vunpack.c.h.b16 %v140
    %v444 = vunpack.c.l.b16 %v141
    %v445 = vunpack.c.h.b16 %v141
    %v446 = vunpack.c.l.b16 %v142
    %v447 = vunpack.c.h.b16 %v142
    %v448 = vunpack.c.l.b16 %v143
    %v449 = vunpack.c.h.b16 %v143
    %v450 = vunpack.c.l.b16 %v144
    %v451 = vunpack.c.h.b16 %v144
    %v452 = vunpack.c.l.b16 %v145
    %v453 = vunpack.c.h.b16 %v145
    %v454 = vunpack.c.l.b16 %v146
    %v455 = vunpack.c.h.b16 %v146
    %v456 = vunpack.c.l.b16 %v147
    %v457 = vunpack.c.h.b16 %v147
    %v458 = vunpack.c.l.b16 %v148
    %v459 = vunpack.c.h.b16 %v148
    %v460 = vunpack.c.l.b16 %v149
    %v461 = vunpack.c.h.b16 %v149
    %v462 = vunpack.c.l.b16 %v150
    %v463 = vunpack.c.h.b16 %v150
    %v464 = vunpack.c.l.b16 %v151
    %v465 = vunpack.c.h.b16 %v151
    %v466 = vunpack.c.l.b16 %v152
    %v467 = vunpack.c.h.b16 %v152
    %v468 = vunpack.c.l.b16 %v153
    %v469 = vunpack.c.h.b16 %v153
    %v470 = vunpack.c.l.b16 %v154
    %v471 = vunpack.c.h.b16 %v154
    %v472 = vunpack.c.l.b16 %v155
    %v473 = vunpack.c.h.b16 %v155
    %v474 = vunpack.c.l.b16 %v156
    %v475 = vunpack.c.h.b16 %v156
    %v476 = vunpack.c.l.b16 %v157
    %v477 = vunpack.c.h.b16 %v157
    %v478 = vunpack.c.l.b16 %v158
    %v479 = vunpack.c.h.b16 %v158
    %v480 = vunpack.c.l.b16 %v159
    %v481 = vunpack.c.h.b16 %v159
    %v482 = vunpack.c.l.b16 %v160
    %v483 = vunpack.c.h.b16 %v160
    %v484 = vunpack.c.l.b16 %v161
    %v485 = vunpack.c.h.b16 %v161
    %v486 = vunpack.c.l.b16 %v162
    %v487 = vunpack.c.h.b16 %v162
    %v488 = vunpack.c.l.b16 %v163
    %v489 = vunpack.c.h.b16 %v163
    %v490 = vunpack.c.l.b16 %v164
    %v491 = vunpack.c.h.b16 %v164
    %v492 = vunpack.c.l.b16 %v165
    %v493 = vunpack.c.h.b16 %v165
    %v494 = vunpack.c.l.b16 %v166
    %v495 = vunpack.c.h.b16 %v166
    %v496 = vunpack.c.l.b16 %v167
    %v497 = vunpack.c.h.b16 %v167
    %v498 = vunpack.c.l.b16 %v168
    %v499 = vunpack.c.h.b16 %v168
    %v500 = vunpack.c.l.b16 %v169
    %v501 = vunpack.c.h.b16 %v169
    %v502 = vunpack.c.l.b16 %v170
    %v503 = vunpack.c.h.b16 %v170
    %v504 = vunpack.c.l.b16 %v171
    %v505 = vunpack.c.h.b16 %v171
    %v506 = vunpack.c.l.b16 %v172
    %v507 = vunpack.c.h.b16 %v172
    %v508 = vunpack.c.l.b16 %v173
    %v509 = vunpack.c.h.b16 %v173
    %v510 = vunpack.c.l.b16 %v174
    %v511 = vunpack.c.h.b16 %v174
    %v512 = vunpack.c.l.b16 %v175
    %v513 = vunpack.c.h.b16 %v175
    %v514 = vunpack.c.l.b16 %v176
    %v515 = vunpack.c.h.b16 %v176
    %v516 = vunpack.c.l.b16 %v177
    %v517 = vunpack.c.h.b16 %v177
    %v518 = vunpack.c.l.b16 %v178
    %v519 = vunpack.c.h.b16 %v178
    %v520 = vunpack.c.l.b16 %v179
    %v521 = vunpack.c.h.b16 %v179
    %v522 = vunpack.c.l.b16 %v180
    %v523 = vunpack.c.h.b16 %v180
    %v524 = vunpack.c.l.b16 %v181
    %v525 = vunpack.c.h.b16 %v181
    %v526 = vunpack.c.l.b16 %v182
    %v527 = vunpack.c.h.b16 %v182
    %v528 = vunpack.c.l.b16 %v183
    %v529 = vunpack.c.h.b16 %v183
    %v530 = vunpack.c.l.b16 %v184
    %v531 = vunpack.c.h.b16 %v184
    %v532 = vunpack.c.l.b16 %v185
    %v533 = vunpack.c.h.b16 %v185
    %v534 = vunpack.c.l.b16 %v186
    %v535 = vunpack.c.h.b16 %v186
    %v536 = vunpack.c.l.b16 %v187
    %v537 = vunpack.c.h.b16 %v187
    %v538 = vunpack.c.l.b16 %v188
    %v539 = vunpack.c.h.b16 %v188
    %v540 = vunpack.c.l.b16 %v189
    %v541 = vunpack.c.h.b16 %v189
    %v542 = vunpack.c.l.b16 %v190
    %v543 = vunpack.c.h.b16 %v190
    %v544 = vunpack.c.l.b16 %v191
    %v545 = vunpack.c.h.b16 %v191
    %v546 = vunpack.c.l.b16 %v192
    %v547 = vunpack.c.h.b16 %v192
    %v548 = vunpack.c.l.b16 %v193
    %v549 = vunpack.c.h.b16 %v193
    %v550 = vunpack.c.l.b16 %v194
    %v551 = vunpack.c.h.b16 %v194
    %v552 = vunpack.c.l.b16 %v195
    %v553 = vunpack.c.h.b16 %v195
    %v554 = vunpack.c.l.b16 %v196
    %v555 = vunpack.c.h.b16 %v196
    %v556 = vunpack.c.l.b16 %v197
    %v557 = vunpack.c.h.b16 %v197
    %v558 = vunpack.c.l.b16 %v198
    %v559 = vunpack.c.h.b16 %v198
    %v560 = vunpack.c.l.b16 %v199
    %v561 = vunpack.c.h.b16 %v199
    %v562 = vunpack.c.l.b16 %v200
    %v563 = vunpack.c.h.b16 %v200
    %v564 = vunpack.c.l.b16 %v201
    %v565 = vunpack.c.h.b16 %v201
    %v566 = vunpack.c.l.b16 %v202
    %v567 = vunpack.c.h.b16 %v202
    %v568 = vunpack.c.l.b16 %v203
    %v569 = vunpack.c.h.b16 %v203
    %v570 = vunpack.c.l.b16 %v204
    %v571 = vunpack.c.h.b16 %v204
    %v572 = vunpack.c.l.b16 %v205
    %v573 = vunpack.c.h.b16 %v205
    %v574 = vunpack.c.l.b16 %v206
    %v575 = vunpack.c.h.b16 %v206
    %v576 = vunpack.c.l.b16 %v207
    %v577 = vunpack.c.h.b16 %v207
    %v578 = vunpack.c.l.b16 %v208
    %v579 = vunpack.c.h.b16 %v208
    %v580 = vunpack.c.l.b16 %v209
    %v581 = vunpack.c.h.b16 %v209
    %v582 = vunpack.c.l.b16 %v210
    %v583 = vunpack.c.h.b16 %v210
    %v584 = vunpack.c.l.b16 %v211
    %v585 = vunpack.c.h.b16 %v211
    %v586 = vunpack.c.l.b16 %v212
    %v587 = vunpack.c.h.b16 %v212
    %v588 = vunpack.c.l.b16 %v213
    %v589 = vunpack.c.h.b16 %v213
    %v590 = vunpack.c.l.b16 %v214
    %v591 = vunpack.c.h.b16 %v214
    %v592 = vunpack.c.l.b16 %v215
    %v593 = vunpack.c.h.b16 %v215
    %v594 = vunpack.c.l.b16 %v216
    %v595 = vunpack.c.h.b16 %v216
    %v596 = vunpack.c.l.b16 %v217
    %v597 = vunpack.c.h.b16 %v217
    %v598 = vunpack.c.l.b16 %v218
    %v599 = vunpack.c.h.b16 %v218
    %v600 = vunpack.c.l.b16 %v219
    %v601 = vunpack.c.h.b16 %v219
    %v602 = vunpack.c.l.b16 %v220
    %v603 = vunpack.c.h.b16 %v220
    %v604 = vunpack.c.l.b16 %v221
    %v605 = vunpack.c.h.b16 %v221
    %v606 = vunpack.c.l.b16 %v222
    %v607 = vunpack.c.h.b16 %v222
    %v608 = vunpack.c.l.b16 %v223
    %v609 = vunpack.c.h.b16 %v223
    %v610 = vunpack.c.l.b16 %v224
    %v611 = vunpack.c.h.b16 %v224
    %v612 = vunpack.c.l.b16 %v225
    %v613 = vunpack.c.h.b16 %v225
    %v614 = vunpack.c.l.b16 %v226
    %v615 = vunpack.c.h.b16 %v226
    %v616 = vunpack.c.l.b16 %v227
    %v617 = vunpack.c.h.b16 %v227
    %v618 = vunpack.c.l.b16 %v228
    %v619 = vunpack.c.h.b16 %v228
    %v620 = vunpack.c.l.b16 %v229
    %v621 = vunpack.c.h.b16 %v229
    %v622 = vunpack.c.l.b16 %v230
    %v623 = vunpack.c.h.b16 %v230
    %v624 = vunpack.c.l.b16 %v231
    %v625 = vunpack.c.h.b16 %v231
    %v626 = vunpack.c.l.b16 %v232
    %v627 = vunpack.c.h.b16 %v232
    %v628 = vunpack.c.l.b16 %v233
    %v629 = vunpack.c.h.b16 %v233
    %v630 = vunpack.c.l.b16 %v234
    %v631 = vunpack.c.h.b16 %v234
    %v632 = vunpack.c.l.b16 %v235
    %v633 = vunpack.c.h.b16 %v235
    %v634 = vunpack.c.l.b16 %v236
    %v635 = vunpack.c.h.b16 %v236
    %v636 = vunpack.c.l.b16 %v237
    %v637 = vunpack.c.h.b16 %v237
    %v638 = vunpack.c.l.b16 %v238
    %v639 = vunpack.c.h.b16 %v238
    %v640 = vunpack.c.l.b16 %v239
    %v641 = vunpack.c.h.b16 %v239
    %v642 = vunpack.c.l.b16 %v240
    %v643 = vunpack.c.h.b16 %v240
    %v644 = vunpack.c.l.b16 %v241
    %v645 = vunpack.c.h.b16 %v241
    %v646 = vunpack.c.l.b16 %v242
    %v647 = vunpack.c.h.b16 %v242
    %v648 = vunpack.c.l.b16 %v243
    %v649 = vunpack.c.h.b16 %v243
    %v650 = vunpack.c.l.b16 %v244
    %v651 = vunpack.c.h.b16 %v244
    %v652 = vunpack.c.l.b16 %v245
    %v653 = vunpack.c.h.b16 %v245
    %v654 = vunpack.c.l.b16 %v246
    %v655 = vunpack.c.h.b16 %v246
    %v656 = vunpack.c.l.b16 %v247
    %v657 = vunpack.c.h.b16 %v247
    %v658 = vunpack.c.l.b16 %v248
    %v659 = vunpack.c.h.b16 %v248
    %v660 = vunpack.c.l.b16 %v249
    %v661 = vunpack.c.h.b16 %v249
    %v662 = vunpack.c.l.b16 %v250
    %v663 = vunpack.c.h.b16 %v250
    %v664 = vunpack.c.l.b16 %v251
    %v665 = vunpack.c.h.b16 %v251
    %v666 = vunpack.c.l.b16 %v252
    %v667 = vunpack.c.h.b16 %v252
    %v668 = vunpack.c.l.b16 %v253
    %v669 = vunpack.c.h.b16 %v253
    %v670 = vunpack.c.l.b16 %v254
    %v671 = vunpack.c.h.b16 %v254
    %v672 = vunpack.c.l.b16 %v255
    %v673 = vunpack.c.h.b16 %v255
    %v674 = vunpack.c.l.b16 %v256
    %v675 = vunpack.c.h.b16 %v256
    %v676 = vunpack.c.l.b16 %v257
    %v677 = vunpack.c.h.b16 %v257
    %v678 = vpack.c.b16 %v424, %v422
    %v679 = vpack.c.b16 %v425, %v423
    %v680 = vpack.c.b16 %v428, %v426
    %v681 = vpack.c.b16 %v429, %v427
    %v682 = vpack.c.b16 %v432, %v430
    %v683 = vpack.c.b16 %v433, %v431
    %v684 = vpack.c.b16 %v436, %v434
    %v685 = vpack.c.b16 %v437, %v435
    %v686 = vpack.c.b16 %v440, %v438
    %v687 = vpack.c.b16 %v441, %v439
    %v688 = vpack.c.b16 %v444, %v442
    %v689 = vpack.c.b16 %v445, %v443
    %v690 = vpack.c.b16 %v448, %v446
    %v691 = vpack.c.b16 %v449, %v447
    %v692 = vpack.c.b16 %v452, %v450
    %v693 = vpack.c.b16 %v453, %v451
    %v694 = vpack.c.b16 %v456, %v454
    %v695 = vpack.c.b16 %v457, %v455
    %v696 = vpack.c.b16 %v460, %v458
    %v697 = vpack.c.b16 %v461, %v459
    %v698 = vpack.c.b16 %v464, %v462
    %v699 = vpack.c.b16 %v465, %v463
    %v700 = vpack.c.b16 %v468, %v466
    %v701 = vpack.c.b16 %v469, %v467
    %v702 = vpack.c.b16 %v472, %v470
    %v703 = vpack.c.b16 %v473, %v471
    %v704 = vpack.c.b16 %v476, %v474
    %v705 = vpack.c.b16 %v477, %v475
    %v706 = vpack.c.b16 %v480, %v478
    %v707 = vpack.c.b16 %v481, %v479
    %v708 = vpack.c.b16 %v484, %v482
    %v709 = vpack.c.b16 %v485, %v483
    %v710 = vpack.c.b16 %v488, %v486
    %v711 = vpack.c.b16 %v489, %v487
    %v712 = vpack.c.b16 %v492, %v490
    %v713 = vpack.c.b16 %v493, %v491
    %v714 = vpack.c.b16 %v496, %v494
    %v715 = vpack.c.b16 %v497, %v495
    %v716 = vpack.c.b16 %v500, %v498
    %v717 = vpack.c.b16 %v501, %v499
    %v718 = vpack.c.b16 %v504, %v502
    %v719 = vpack.c.b16 %v505, %v503
    %v720 = vpack.c.b16 %v508, %v506
    %v721 = vpack.c.b16 %v509, %v507
    %v722 = vpack.c.b16 %v512, %v510
    %v723 = vpack.c.b16 %v513, %v511
    %v724 = vpack.c.b16 %v516, %v514
    %v725 = vpack.c.b16 %v517, %v515
    %v726 = vpack.c.b16 %v520, %v518
    %v727 = vpack.c.b16 %v521, %v519
    %v728 = vpack.c.b16 %v524, %v522
    %v729 = vpack.c.b16 %v525, %v523
    %v730 = vpack.c.b16 %v528, %v526
    %v731 = vpack.c.b16 %v529, %v527
    %v732 = vpack.c.b16 %v532, %v530
    %v733 = vpack.c.b16 %v533, %v531
    %v734 = vpack.c.b16 %v536, %v534
    %v735 = vpack.c.b16 %v537, %v535
    %v736 = vpack.c.b16 %v540, %v538
    %v737 = vpack.c.b16 %v541, %v539
    %v738 = vpack.c.b16 %v544, %v542
    %v739 = vpack.c.b16 %v545, %v543
    %v740 = vpack.c.b16 %v548, %v546
    %v741 = vpack.c.b16 %v549, %v547
    %v742 = vpack.c.b16 %v552, %v550
    %v743 = vpack.c.b16 %v553, %v551
    %v744 = vpack.c.b16 %v556, %v554
    %v745 = vpack.c.b16 %v557, %v555
    %v746 = vpack.c.b16 %v560, %v558
    %v747 = vpack.c.b16 %v561, %v559
    %v748 = vpack.c.b16 %v564, %v562
    %v749 = vpack.c.b16 %v565, %v563
    %v750 = vpack.c.b16 %v568, %v566
    %v751 = vpack.c.b16 %v569, %v567
    %v752 = vpack.c.b16 %v572, %v570
    %v753 = vpack.c.b16 %v573, %v571
    %v754 = vpack.c.b16 %v576, %v574
    %v755 = vpack.c.b16 %v577, %v575
    %v756 = vpack.c.b16 %v580, %v578
    %v757 = vpack.c.b16 %v581, %v579
    %v758 = vpack.c.b16 %v584, %v582
    %v759 = vpack.c.b16 %v585, %v583
    %v760 = vpack.c.b16 %v588, %v586
    %v761 = vpack.c.b16 %v589, %v587
    %v762 = vpack.c.b16 %v592, %v590
    %v763 = vpack.c.b16 %v593, %v591
    %v764 = vpack.c.b16 %v596, %v594
    %v765 = vpack.c.b16 %v597, %v595
    %v766 = vpack.c.b16 %v600, %v598
    %v767 = vpack.c.b16 %v601, %v599
    %v768 = vpack.c.b16 %v604, %v602
    %v769 = vpack.c.b16 %v605, %v603
    %v770 = vpack.c.b16 %v608, %v606
    %v771 = vpack.c.b16 %v609, %v607
    %v772 = vpack.c.b16 %v612, %v610
    %v773 = vpack.c.b16 %v613, %v611
    %v774 = vpack.c.b16 %v616, %v614
    %v775 = vpack.c.b16 %v617, %v615
    %v776 = vpack.c.b16 %v620, %v618
    %v777 = vpack.c.b16 %v621, %v619
    %v778 = vpack.c.b16 %v624, %v622
    %v779 = vpack.c.b16 %v625, %v623
    %v780 = vpack.c.b16 %v628, %v626
    %v781 = vpack.c.b16 %v629, %v627
    %v782 = vpack.c.b16 %v632, %v630
    %v783 = vpack.c.b16 %v633, %v631
    %v784 = vpack.c.b16 %v636, %v634
    %v785 = vpack.c.b16 %v637, %v635
    %v786 = vpack.c.b16 %v640, %v638
    %v787 = vpack.c.b16 %v641, %v639
    %v788 = vpack.c.b16 %v644, %v642
    %v789 = vpack.c.b16 %v645, %v643
    %v790 = vpack.c.b16 %v648, %v646
    %v791 = vpack.c.b16 %v649, %v647
    %v792 = vpack.c.b16 %v652, %v650
    %v793 = vpack.c.b16 %v653, %v651
    %v794 = vpack.c.b16 %v656, %v654
    %v795 = vpack.c.b16 %v657, %v655
    %v796 = vpack.c.b16 %v660, %v658
    %v797 = vpack.c.b16 %v661, %v659
    %v798 = vpack.c.b16 %v664, %v662
    %v799 = vpack.c.b16 %v665, %v663
    %v800 = vpack.c.b16 %v668, %v666
    %v801 = vpack.c.b16 %v669, %v667
    %v802 = vpack.c.b16 %v672, %v670
    %v803 = vpack.c.b16 %v673, %v671
    %v804 = vpack.c.b16 %v676, %v674
    %v805 = vpack.c.b16 %v677, %v675
    %934 = vmatprep.subr.bf16.mxu0 %v679
    %935 = vmatpush1.bf16.msra.mxu0 %v678
    %936 = vmatprep.subr.bf16.mxu0 %v681
    %937 = vmatpush1.bf16.msra.mxu0 %v680
    %938 = vmatprep.subr.bf16.mxu0 %v683
    %939 = vmatpush1.bf16.msra.mxu0 %v682
    %940 = vmatprep.subr.bf16.mxu0 %v685
    %941 = vmatpush1.bf16.msra.mxu0 %v684
    %942 = vmatprep.subr.bf16.mxu0 %v687
    %943 = vmatpush1.bf16.msra.mxu0 %v686
    %944 = vmatprep.subr.bf16.mxu0 %v689
    %945 = vmatpush1.bf16.msra.mxu0 %v688
    %946 = vmatprep.subr.bf16.mxu0 %v691
    %947 = vmatpush1.bf16.msra.mxu0 %v690
    %948 = vmatprep.subr.bf16.mxu0 %v693
    %949 = vmatpush1.bf16.msra.mxu0 %v692
    %950 = vmatprep.subr.bf16.mxu0 %v695
    %951 = vmatpush1.bf16.msra.mxu0 %v694
    %952 = vmatprep.subr.bf16.mxu0 %v697
    %953 = vmatpush1.bf16.msra.mxu0 %v696
    %954 = vmatprep.subr.bf16.mxu0 %v699
    %955 = vmatpush1.bf16.msra.mxu0 %v698
    %956 = vmatprep.subr.bf16.mxu0 %v701
    %957 = vmatpush1.bf16.msra.mxu0 %v700
    %958 = vmatprep.subr.bf16.mxu0 %v703
    %959 = vmatpush1.bf16.msra.mxu0 %v702
    %960 = vmatprep.subr.bf16.mxu0 %v705
    %961 = vmatpush1.bf16.msra.mxu0 %v704
    %962 = vmatprep.subr.bf16.mxu0 %v707
    %963 = vmatpush1.bf16.msra.mxu0 %v706
    %964 = vmatprep.subr.bf16.mxu0 %v709
    %965 = vmatpush1.bf16.msra.mxu0 %v708
    %966 = vmatprep.mubr.bf16.mxu0 %v279
    %967 = vmatmul.mubr.bf16.gmra.mrb[0].mxu0 %v278
    %v968 = vpop.f32.mrb[0].mxu0
    %v969 = vadd.f32 %v261, %v968
    %v970 = vpop.f32.mrb[0].mxu0
    %v971 = vadd.f32 %v265, %v970
    %v972 = vpop.f32.mrb[0].mxu0
    %v973 = vpop.f32.mrb[0].mxu0
    %974 = vdwg.mxu0
    %975 = vmatprep.subr.bf16.mxu0 %v711
    %976 = vmatpush1.bf16.msra.mxu0 %v710
    %977 = vmatprep.subr.bf16.mxu0 %v713
    %978 = vmatpush1.bf16.msra.mxu0 %v712
    %979 = vmatprep.subr.bf16.mxu0 %v715
    %980 = vmatpush1.bf16.msra.mxu0 %v714
    %981 = vmatprep.subr.bf16.mxu0 %v717
    %982 = vmatpush1.bf16.msra.mxu0 %v716
    %983 = vmatprep.subr.bf16.mxu0 %v719
    %984 = vmatpush1.bf16.msra.mxu0 %v718
    %985 = vmatprep.subr.bf16.mxu0 %v721
    %986 = vmatpush1.bf16.msra.mxu0 %v720
    %987 = vmatprep.subr.bf16.mxu0 %v723
    %988 = vmatpush1.bf16.msra.mxu0 %v722
    %989 = vmatprep.subr.bf16.mxu0 %v725
    %990 = vmatpush1.bf16.msra.mxu0 %v724
    %991 = vmatprep.subr.bf16.mxu0 %v727
    %992 = vmatpush1.bf16.msra.mxu0 %v726
    %993 = vmatprep.subr.bf16.mxu0 %v729
    %994 = vmatpush1.bf16.msra.mxu0 %v728
    %995 = vmatprep.subr.bf16.mxu0 %v731
    %996 = vmatpush1.bf16.msra.mxu0 %v730
    %997 = vmatprep.subr.bf16.mxu0 %v733
    %998 = vmatpush1.bf16.msra.mxu0 %v732
    %999 = vmatprep.subr.bf16.mxu0 %v735
    %1000 = vmatpush1.bf16.msra.mxu0 %v734
    %1001 = vmatprep.subr.bf16.mxu0 %v737
    %1002 = vmatpush1.bf16.msra.mxu0 %v736
    %1003 = vmatprep.subr.bf16.mxu0 %v739
    %1004 = vmatpush1.bf16.msra.mxu0 %v738
    %1005 = vmatprep.subr.bf16.mxu0 %v741
    %1006 = vmatpush1.bf16.msra.mxu0 %v740
    %1007 = vmatprep.mubr.bf16.mxu0 %v281
    %1008 = vmatmul.mubr.bf16.gmra.mrb[0].mxu0 %v280
    %v1009 = vpop.f32.mrb[0].mxu0
    %v1010 = vadd.f32 %v969, %v1009
    %v1011 = vpop.f32.mrb[0].mxu0
    %v1012 = vadd.f32 %v971, %v1011
    %v1013 = vpop.f32.mrb[0].mxu0
    %v1014 = vpop.f32.mrb[0].mxu0
    %1015 = vdwg.mxu0
    %1016 = vmatprep.subr.bf16.mxu0 %v743
    %1017 = vmatpush1.bf16.msra.mxu0 %v742
    %1018 = vmatprep.subr.bf16.mxu0 %v745
    %1019 = vmatpush1.bf16.msra.mxu0 %v744
    %1020 = vmatprep.subr.bf16.mxu0 %v747
    %1021 = vmatpush1.bf16.msra.mxu0 %v746
    %1022 = vmatprep.subr.bf16.mxu0 %v749
    %1023 = vmatpush1.bf16.msra.mxu0 %v748
    %1024 = vmatprep.subr.bf16.mxu0 %v751
    %1025 = vmatpush1.bf16.msra.mxu0 %v750
    %1026 = vmatprep.subr.bf16.mxu0 %v753
    %1027 = vmatpush1.bf16.msra.mxu0 %v752
    %1028 = vmatprep.subr.bf16.mxu0 %v755
    %1029 = vmatpush1.bf16.msra.mxu0 %v754
    %1030 = vmatprep.subr.bf16.mxu0 %v757
    %1031 = vmatpush1.bf16.msra.mxu0 %v756
    %1032 = vmatprep.subr.bf16.mxu0 %v759
    %1033 = vmatpush1.bf16.msra.mxu0 %v758
    %1034 = vmatprep.subr.bf16.mxu0 %v761
    %1035 = vmatpush1.bf16.msra.mxu0 %v760
    %1036 = vmatprep.subr.bf16.mxu0 %v763
    %1037 = vmatpush1.bf16.msra.mxu0 %v762
    %1038 = vmatprep.subr.bf16.mxu0 %v765
    %1039 = vmatpush1.bf16.msra.mxu0 %v764
    %1040 = vmatprep.subr.bf16.mxu0 %v767
    %1041 = vmatpush1.bf16.msra.mxu0 %v766
    %1042 = vmatprep.subr.bf16.mxu0 %v769
    %1043 = vmatpush1.bf16.msra.mxu0 %v768
    %1044 = vmatprep.subr.bf16.mxu0 %v771
    %1045 = vmatpush1.bf16.msra.mxu0 %v770
    %1046 = vmatprep.subr.bf16.mxu0 %v773
    %1047 = vmatpush1.bf16.msra.mxu0 %v772
    %1048 = vmatprep.mubr.bf16.mxu0 %v283
    %1049 = vmatmul.mubr.bf16.gmra.mrb[0].mxu0 %v282
    %v1050 = vpop.f32.mrb[0].mxu0
    %v1051 = vadd.f32 %v1010, %v1050
    %v1052 = vpop.f32.mrb[0].mxu0
    %v1053 = vadd.f32 %v1012, %v1052
    %v1054 = vpop.f32.mrb[0].mxu0
    %v1055 = vpop.f32.mrb[0].mxu0
    %1056 = vdwg.mxu0
    %1057 = vmatprep.subr.bf16.mxu0 %v775
    %1058 = vmatpush1.bf16.msra.mxu0 %v774
    %1059 = vmatprep.subr.bf16.mxu0 %v777
    %1060 = vmatpush1.bf16.msra.mxu0 %v776
    %1061 = vmatprep.subr.bf16.mxu0 %v779
    %1062 = vmatpush1.bf16.msra.mxu0 %v778
    %1063 = vmatprep.subr.bf16.mxu0 %v781
    %1064 = vmatpush1.bf16.msra.mxu0 %v780
    %1065 = vmatprep.subr.bf16.mxu0 %v783
    %1066 = vmatpush1.bf16.msra.mxu0 %v782
    %1067 = vmatprep.subr.bf16.mxu0 %v785
    %1068 = vmatpush1.bf16.msra.mxu0 %v784
    %1069 = vmatprep.subr.bf16.mxu0 %v787
    %1070 = vmatpush1.bf16.msra.mxu0 %v786
    %1071 = vmatprep.subr.bf16.mxu0 %v789
    %1072 = vmatpush1.bf16.msra.mxu0 %v788
    %1073 = vmatprep.subr.bf16.mxu0 %v791
    %1074 = vmatpush1.bf16.msra.mxu0 %v790
    %1075 = vmatprep.subr.bf16.mxu0 %v793
    %1076 = vmatpush1.bf16.msra.mxu0 %v792
    %1077 = vmatprep.subr.bf16.mxu0 %v795
    %1078 = vmatpush1.bf16.msra.mxu0 %v794
    %1079 = vmatprep.subr.bf16.mxu0 %v797
    %1080 = vmatpush1.bf16.msra.mxu0 %v796
    %1081 = vmatprep.subr.bf16.mxu0 %v799
    %1082 = vmatpush1.bf16.msra.mxu0 %v798
    %1083 = vmatprep.subr.bf16.mxu0 %v801
    %1084 = vmatpush1.bf16.msra.mxu0 %v800
    %1085 = vmatprep.subr.bf16.mxu0 %v803
    %1086 = vmatpush1.bf16.msra.mxu0 %v802
    %1087 = vmatprep.subr.bf16.mxu0 %v805
    %1088 = vmatpush1.bf16.msra.mxu0 %v804
    %1089 = vmatprep.mubr.bf16.mxu0 %v285
    %1090 = vmatmul.mubr.bf16.gmra.mrb[0].mxu0 %v284
    %v1091 = vpop.f32.mrb[0].mxu0
    %v1092 = vadd.f32 %v1051, %v1091
    %v1093 = vpop.f32.mrb[0].mxu0
    %v1094 = vadd.f32 %v1053, %v1093
    %v1095 = vpop.f32.mrb[0].mxu0
    %v1096 = vpop.f32.mrb[0].mxu0
    %1097 = vdwg.mxu0
    %v1098 = vmax.f32 %v1092, 0.0
    %v1099 = vmax.f32 %v1094, 0.0
    %v1100 = vpack.c.bf16 %v1098, %v1098
    %v1101 = vpack.c.bf16 %v1099, %v1099
    %v1102 = vld [vmem:[#allocation7] sm:$0xf]
    %v1103 = vld [vmem:[#allocation7 + $0x4] sm:$0xf]
    %v1104 = vld [vmem:[#allocation7 + $0x8] sm:$0xf]
    %v1105 = vld [vmem:[#allocation7 + $0xc] sm:$0xf]
    %v1106 = vld [vmem:[#allocation7 + $0x10] sm:$0xf]
    %v1107 = vld [vmem:[#allocation7 + $0x14] sm:$0xf]
    %v1108 = vld [vmem:[#allocation7 + $0x18] sm:$0xf]
    %v1109 = vld [vmem:[#allocation7 + $0x1c] sm:$0xf]
    %v1110 = vld [vmem:[#allocation7 + $0x20] sm:$0xf]
    %v1111 = vld [vmem:[#allocation7 + $0x24] sm:$0xf]
    %v1112 = vld [vmem:[#allocation7 + $0x28] sm:$0xf]
    %v1113 = vld [vmem:[#allocation7 + $0x2c] sm:$0xf]
    %v1114 = vld [vmem:[#allocation7 + $0x30] sm:$0xf]
    %v1115 = vld [vmem:[#allocation7 + $0x34] sm:$0xf]
    %v1116 = vld [vmem:[#allocation7 + $0x38] sm:$0xf]
    %v1117 = vld [vmem:[#allocation7 + $0x3c] sm:$0xf]
    %v1118 = vld [vmem:[#allocation7 + $0x40] sm:$0xf]
    %v1119 = vld [vmem:[#allocation7 + $0x44] sm:$0xf]
    %v1120 = vld [vmem:[#allocation7 + $0x48] sm:$0xf]
    %v1121 = vld [vmem:[#allocation7 + $0x4c] sm:$0xf]
    %v1122 = vld [vmem:[#allocation7 + $0x50] sm:$0xf]
    %v1123 = vld [vmem:[#allocation7 + $0x54] sm:$0xf]
    %v1124 = vld [vmem:[#allocation7 + $0x58] sm:$0xf]
    %v1125 = vld [vmem:[#allocation7 + $0x5c] sm:$0xf]
    %v1126 = vld [vmem:[#allocation7 + $0x60] sm:$0xf]
    %v1127 = vld [vmem:[#allocation7 + $0x64] sm:$0xf]
    %v1128 = vld [vmem:[#allocation7 + $0x68] sm:$0xf]
    %v1129 = vld [vmem:[#allocation7 + $0x6c] sm:$0xf]
    %v1130 = vld [vmem:[#allocation7 + $0x70] sm:$0xf]
    %v1131 = vld [vmem:[#allocation7 + $0x74] sm:$0xf]
    %v1132 = vld [vmem:[#allocation7 + $0x78] sm:$0xf]
    %v1133 = vld [vmem:[#allocation7 + $0x7c] sm:$0xf]
    %v1134 = vlaneseq
    %v1135 = vshrl.u32 %v1134, 7
    %v1136 = vsub.s32 1, %v1135
    %v1137 = vrot.slane %v124, %v1136
    %v1170 = vunpack.c.l.b16 %v1102
    %v1171 = vunpack.c.l.b16 %v1103
    %v1172 = vunpack.c.l.b16 %v1104
    %v1173 = vunpack.c.l.b16 %v1105
    %v1174 = vunpack.c.l.b16 %v1106
    %v1175 = vunpack.c.l.b16 %v1107
    %v1176 = vunpack.c.l.b16 %v1108
    %v1177 = vunpack.c.l.b16 %v1109
    %v1178 = vunpack.c.l.b16 %v1110
    %v1179 = vunpack.c.l.b16 %v1111
    %v1180 = vunpack.c.l.b16 %v1112
    %v1181 = vunpack.c.l.b16 %v1113
    %v1182 = vunpack.c.l.b16 %v1114
    %v1183 = vunpack.c.l.b16 %v1115
    %v1184 = vunpack.c.l.b16 %v1116
    %v1185 = vunpack.c.l.b16 %v1117
    %v1186 = vunpack.c.l.b16 %v1118
    %v1187 = vunpack.c.l.b16 %v1119
    %v1188 = vunpack.c.l.b16 %v1120
    %v1189 = vunpack.c.l.b16 %v1121
    %v1190 = vunpack.c.l.b16 %v1122
    %v1191 = vunpack.c.l.b16 %v1123
    %v1192 = vunpack.c.l.b16 %v1124
    %v1193 = vunpack.c.l.b16 %v1125
    %v1194 = vunpack.c.l.b16 %v1126
    %v1195 = vunpack.c.l.b16 %v1127
    %v1196 = vunpack.c.l.b16 %v1128
    %v1197 = vunpack.c.l.b16 %v1129
    %v1198 = vunpack.c.l.b16 %v1130
    %v1199 = vunpack.c.l.b16 %v1131
    %v1200 = vunpack.c.l.b16 %v1132
    %v1201 = vunpack.c.l.b16 %v1133
    %v1202 = vpack.c.b16 %v1171, %v1170
    %v1203 = vpack.c.b16 %v1173, %v1172
    %v1204 = vpack.c.b16 %v1175, %v1174
    %v1205 = vpack.c.b16 %v1177, %v1176
    %v1206 = vpack.c.b16 %v1179, %v1178
    %v1207 = vpack.c.b16 %v1181, %v1180
    %v1208 = vpack.c.b16 %v1183, %v1182
    %v1209 = vpack.c.b16 %v1185, %v1184
    %v1210 = vpack.c.b16 %v1187, %v1186
    %v1211 = vpack.c.b16 %v1189, %v1188
    %v1212 = vpack.c.b16 %v1191, %v1190
    %v1213 = vpack.c.b16 %v1193, %v1192
    %v1214 = vpack.c.b16 %v1195, %v1194
    %v1215 = vpack.c.b16 %v1197, %v1196
    %v1216 = vpack.c.b16 %v1199, %v1198
    %v1217 = vpack.c.b16 %v1201, %v1200
    %1234 = vmatprep.subr.bf16.mxu0 0
    %1235 = vmatpush1.bf16.msra.mxu0 %v1202
    %1236 = vmatprep.subr.bf16.mxu0 0
    %1237 = vmatpush1.bf16.msra.mxu0 %v1203
    %1238 = vmatprep.subr.bf16.mxu0 0
    %1239 = vmatpush1.bf16.msra.mxu0 %v1204
    %1240 = vmatprep.subr.bf16.mxu0 0
    %1241 = vmatpush1.bf16.msra.mxu0 %v1205
    %1242 = vmatprep.subr.bf16.mxu0 0
    %1243 = vmatpush1.bf16.msra.mxu0 %v1206
    %1244 = vmatprep.subr.bf16.mxu0 0
    %1245 = vmatpush1.bf16.msra.mxu0 %v1207
    %1246 = vmatprep.subr.bf16.mxu0 0
    %1247 = vmatpush1.bf16.msra.mxu0 %v1208
    %1248 = vmatprep.subr.bf16.mxu0 0
    %1249 = vmatpush1.bf16.msra.mxu0 %v1209
    %1250 = vmatprep.subr.bf16.mxu0 0
    %1251 = vmatpush1.bf16.msra.mxu0 %v1210
    %1252 = vmatprep.subr.bf16.mxu0 0
    %1253 = vmatpush1.bf16.msra.mxu0 %v1211
    %1254 = vmatprep.subr.bf16.mxu0 0
    %1255 = vmatpush1.bf16.msra.mxu0 %v1212
    %1256 = vmatprep.subr.bf16.mxu0 0
    %1257 = vmatpush1.bf16.msra.mxu0 %v1213
    %1258 = vmatprep.subr.bf16.mxu0 0
    %1259 = vmatpush1.bf16.msra.mxu0 %v1214
    %1260 = vmatprep.subr.bf16.mxu0 0
    %1261 = vmatpush1.bf16.msra.mxu0 %v1215
    %1262 = vmatprep.subr.bf16.mxu0 0
    %1263 = vmatpush1.bf16.msra.mxu0 %v1216
    %1264 = vmatprep.subr.bf16.mxu0 0
    %1265 = vmatpush1.bf16.msra.mxu0 %v1217
    %1266 = vmatprep.mubr.bf16.mxu0 %v1101
    %1267 = vmatmul.mubr.bf16.gmra.mrb[0].mxu0 %v1100
    %v1268 = vpop.f32.mrb[0].mxu0
    %v1269 = vadd.f32 %v1137, %v1268
    %v1270 = vpop.f32.mrb[0].mxu0
    %v1271 = vpop.f32.mrb[0].mxu0
    %v1272 = vpop.f32.mrb[0].mxu0
    %1273 = vdwg.mxu0
    %v1274 = vmax.f32 %v1269, 0.0
    %v1275 = vpack.c.bf16 %v1274, %v1274
    %v1276 = vld [vmem:[#allocation8] sm:$0xf]
    %v1277 = vld [vmem:[#allocation8 + $0x4] sm:$0xf]
    %v1278 = vld [vmem:[#allocation8 + $0x8] sm:$0xf]
    %v1279 = vld [vmem:[#allocation8 + $0xc] sm:$0xf]
    %v1280 = vld [vmem:[#allocation8 + $0x10] sm:$0xf]
    %v1281 = vld [vmem:[#allocation8 + $0x14] sm:$0xf]
    %v1282 = vld [vmem:[#allocation8 + $0x18] sm:$0xf]
    %v1283 = vld [vmem:[#allocation8 + $0x1c] sm:$0xf]
    %v1284 = vld [vmem:[#allocation8 + $0x20] sm:$0xf]
    %v1285 = vld [vmem:[#allocation8 + $0x24] sm:$0xf]
    %v1286 = vld [vmem:[#allocation8 + $0x28] sm:$0xf]
    %v1287 = vld [vmem:[#allocation8 + $0x2c] sm:$0xf]
    %v1288 = vld [vmem:[#allocation8 + $0x30] sm:$0xf]
    %v1289 = vld [vmem:[#allocation8 + $0x34] sm:$0xf]
    %v1290 = vld [vmem:[#allocation8 + $0x38] sm:$0xf]
    %v1291 = vld [vmem:[#allocation8 + $0x3c] sm:$0xf]
    %v1292 = vlaneseq
    %v1293 = vshrl.u32 %v1292, 7
    %v1294 = vsub.s32 2, %v1293
    %v1295 = vrot.slane %v124, %v1294
    %v1312 = vunpack.c.l.b16 %v1276
    %v1313 = vunpack.c.l.b16 %v1277
    %v1314 = vunpack.c.l.b16 %v1278
    %v1315 = vunpack.c.l.b16 %v1279
    %v1316 = vunpack.c.l.b16 %v1280
    %v1317 = vunpack.c.l.b16 %v1281
    %v1318 = vunpack.c.l.b16 %v1282
    %v1319 = vunpack.c.l.b16 %v1283
    %v1320 = vunpack.c.l.b16 %v1284
    %v1321 = vunpack.c.l.b16 %v1285
    %v1322 = vunpack.c.l.b16 %v1286
    %v1323 = vunpack.c.l.b16 %v1287
    %v1324 = vunpack.c.l.b16 %v1288
    %v1325 = vunpack.c.l.b16 %v1289
    %v1326 = vunpack.c.l.b16 %v1290
    %v1327 = vunpack.c.l.b16 %v1291
    %v1328 = vpack.c.b16 %v1313, %v1312
    %v1329 = vpack.c.b16 %v1315, %v1314
    %v1330 = vpack.c.b16 %v1317, %v1316
    %v1331 = vpack.c.b16 %v1319, %v1318
    %v1332 = vpack.c.b16 %v1321, %v1320
    %v1333 = vpack.c.b16 %v1323, %v1322
    %v1334 = vpack.c.b16 %v1325, %v1324
    %v1335 = vpack.c.b16 %v1327, %v1326
    %1344 = vmatprep.subr.bf16.mxu0 0
    %1345 = vmatpush1.bf16.msra.mxu0 %v1328
    %1346 = vmatprep.subr.bf16.mxu0 0
    %1347 = vmatpush1.bf16.msra.mxu0 %v1329
    %1348 = vmatprep.subr.bf16.mxu0 0
    %1349 = vmatpush1.bf16.msra.mxu0 %v1330
    %1350 = vmatprep.subr.bf16.mxu0 0
    %1351 = vmatpush1.bf16.msra.mxu0 %v1331
    %1352 = vmatprep.subr.bf16.mxu0 0
    %1353 = vmatpush1.bf16.msra.mxu0 %v1332
    %1354 = vmatprep.subr.bf16.mxu0 0
    %1355 = vmatpush1.bf16.msra.mxu0 %v1333
    %1356 = vmatprep.subr.bf16.mxu0 0
    %1357 = vmatpush1.bf16.msra.mxu0 %v1334
    %1358 = vmatprep.subr.bf16.mxu0 0
    %1359 = vmatpush1.bf16.msra.mxu0 %v1335
    %1360 = vmatprep.subr.bf16.mxu0 0
    %1361 = vmatpush1.bf16.msra.mxu0 0
    %1362 = vmatprep.subr.bf16.mxu0 0
    %1363 = vmatpush1.bf16.msra.mxu0 0
    %1364 = vmatprep.subr.bf16.mxu0 0
    %1365 = vmatpush1.bf16.msra.mxu0 0
    %1366 = vmatprep.subr.bf16.mxu0 0
    %1367 = vmatpush1.bf16.msra.mxu0 0
    %1368 = vmatprep.subr.bf16.mxu0 0
    %1369 = vmatpush1.bf16.msra.mxu0 0
    %1370 = vmatprep.subr.bf16.mxu0 0
    %1371 = vmatpush1.bf16.msra.mxu0 0
    %1372 = vmatprep.subr.bf16.mxu0 0
    %1373 = vmatpush1.bf16.msra.mxu0 0
    %1374 = vmatprep.subr.bf16.mxu0 0
    %1375 = vmatpush1.bf16.msra.mxu0 0
    %1376 = vmatprep.mubr.bf16.mxu0 0
    %1377 = vmatmul.mubr.bf16.gmra.mrb[0].mxu0 %v1275
    %v1378 = vpop.f32.mrb[0].mxu0
    %v1379 = vadd.f32 %v1295, %v1378
    %v1380 = vpop.f32.mrb[0].mxu0
    %v1381 = vpop.f32.mrb[0].mxu0
    %v1382 = vpop.f32.mrb[0].mxu0
    %1383 = vdwg.mxu0
    %v1384 = vmax.f32 %v1379, 0.0
    %v1385 = vpack.c.bf16 %v1384, %v1384
    %v1386 = vld [vmem:[#allocation10] sm:$0xf]
    %v1387 = vld [vmem:[#allocation10 + $0x4] sm:$0xf]
    %v1388 = vld [vmem:[#allocation10 + $0x8] sm:$0xf]
    %v1389 = vld [vmem:[#allocation10 + $0xc] sm:$0xf]
    %v1390 = vld [vmem:[#allocation10 + $0x10] sm:$0xf]
    %v1391 = vld [vmem:[#allocation10 + $0x14] sm:$0xf]
    %v1392 = vld [vmem:[#allocation10 + $0x18] sm:$0xf]
    %v1393 = vld [vmem:[#allocation10 + $0x1c] sm:$0xf]
    %v1394 = vld [vmem:[#allocation10 + $0x20] sm:$0xf]
    %v1395 = vld [vmem:[#allocation10 + $0x24] sm:$0xf]
    %v1396 = vld [vmem:[#allocation10 + $0x28] sm:$0xf]
    %v1397 = vld [vmem:[#allocation10 + $0x2c] sm:$0xf]
    %v1398 = vld [vmem:[#allocation10 + $0x30] sm:$0xf]
    %v1399 = vld [vmem:[#allocation10 + $0x34] sm:$0xf]
    %v1400 = vld [vmem:[#allocation10 + $0x38] sm:$0xf]
    %v1401 = vld [vmem:[#allocation10 + $0x3c] sm:$0xf]
    %v1402 = vlaneseq
    %v1403 = vshrl.u32 %v1402, 7
    %v1404 = vsub.s32 3, %v1403
    %v1405 = vrot.slane %v124, %v1404
    %v1422 = vunpack.c.l.b16 %v1386
    %v1423 = vunpack.c.l.b16 %v1387
    %v1424 = vunpack.c.l.b16 %v1388
    %v1425 = vunpack.c.l.b16 %v1389
    %v1426 = vunpack.c.l.b16 %v1390
    %v1427 = vunpack.c.l.b16 %v1391
    %v1428 = vunpack.c.l.b16 %v1392
    %v1429 = vunpack.c.l.b16 %v1393
    %v1430 = vunpack.c.l.b16 %v1394
    %v1431 = vunpack.c.l.b16 %v1395
    %v1432 = vunpack.c.l.b16 %v1396
    %v1433 = vunpack.c.l.b16 %v1397
    %v1434 = vunpack.c.l.b16 %v1398
    %v1435 = vunpack.c.l.b16 %v1399
    %v1436 = vunpack.c.l.b16 %v1400
    %v1437 = vunpack.c.l.b16 %v1401
    %v1438 = vpack.c.b16 %v1423, %v1422
    %v1439 = vpack.c.b16 %v1425, %v1424
    %v1440 = vpack.c.b16 %v1427, %v1426
    %v1441 = vpack.c.b16 %v1429, %v1428
    %v1442 = vpack.c.b16 %v1431, %v1430
    %v1443 = vpack.c.b16 %v1433, %v1432
    %v1444 = vpack.c.b16 %v1435, %v1434
    %v1445 = vpack.c.b16 %v1437, %v1436
    %1454 = vmatprep.subr.bf16.mxu0 0
    %1455 = vmatpush1.bf16.msra.mxu0 %v1438
    %1456 = vmatprep.subr.bf16.mxu0 0
    %1457 = vmatpush1.bf16.msra.mxu0 %v1439
    %1458 = vmatprep.subr.bf16.mxu0 0
    %1459 = vmatpush1.bf16.msra.mxu0 %v1440
    %1460 = vmatprep.subr.bf16.mxu0 0
    %1461 = vmatpush1.bf16.msra.mxu0 %v1441
    %1462 = vmatprep.subr.bf16.mxu0 0
    %1463 = vmatpush1.bf16.msra.mxu0 %v1442
    %1464 = vmatprep.subr.bf16.mxu0 0
    %1465 = vmatpush1.bf16.msra.mxu0 %v1443
    %1466 = vmatprep.subr.bf16.mxu0 0
    %1467 = vmatpush1.bf16.msra.mxu0 %v1444
    %1468 = vmatprep.subr.bf16.mxu0 0
    %1469 = vmatpush1.bf16.msra.mxu0 %v1445
    %1470 = vmatprep.subr.bf16.mxu0 0
    %1471 = vmatpush1.bf16.msra.mxu0 0
    %1472 = vmatprep.subr.bf16.mxu0 0
    %1473 = vmatpush1.bf16.msra.mxu0 0
    %1474 = vmatprep.subr.bf16.mxu0 0
    %1475 = vmatpush1.bf16.msra.mxu0 0
    %1476 = vmatprep.subr.bf16.mxu0 0
    %1477 = vmatpush1.bf16.msra.mxu0 0
    %1478 = vmatprep.subr.bf16.mxu0 0
    %1479 = vmatpush1.bf16.msra.mxu0 0
    %1480 = vmatprep.subr.bf16.mxu0 0
    %1481 = vmatpush1.bf16.msra.mxu0 0
    %1482 = vmatprep.subr.bf16.mxu0 0
    %1483 = vmatpush1.bf16.msra.mxu0 0
    %1484 = vmatprep.subr.bf16.mxu0 0
    %1485 = vmatpush1.bf16.msra.mxu0 0
    %1486 = vmatprep.mubr.bf16.mxu0 0
    %1487 = vmatmul.mubr.bf16.gmra.mrb[0].mxu0 %v1385
    %v1488 = vpop.f32.mrb[0].mxu0
    %v1489 = vadd.f32 %v1405, %v1488
    %v1490 = vpop.f32.mrb[0].mxu0
    %v1491 = vpop.f32.mrb[0].mxu0
    %v1492 = vpop.f32.mrb[0].mxu0
    %1493 = vdwg.mxu0
    %v1494 = vmax.f32 %v1489, 0.0
    %v1495 = vpack.c.bf16 %v1494, %v1494
    %v1496 = vld [vmem:[#allocation11] sm:$0xf]
    %v1497 = vld [vmem:[#allocation11 + $0x4] sm:$0xf]
    %v1498 = vld [vmem:[#allocation11 + $0x8] sm:$0xf]
    %v1499 = vld [vmem:[#allocation11 + $0xc] sm:$0xf]
    %v1500 = vld [vmem:[#allocation11 + $0x10] sm:$0xf]
    %v1501 = vld [vmem:[#allocation11 + $0x14] sm:$0xf]
    %v1502 = vld [vmem:[#allocation11 + $0x18] sm:$0xf]
    %v1503 = vld [vmem:[#allocation11 + $0x1c] sm:$0xf]
    %v1504 = vld [vmem:[#allocation11 + $0x20] sm:$0xf]
    %v1505 = vld [vmem:[#allocation11 + $0x24] sm:$0xf]
    %v1506 = vld [vmem:[#allocation11 + $0x28] sm:$0xf]
    %v1507 = vld [vmem:[#allocation11 + $0x2c] sm:$0xf]
    %v1508 = vld [vmem:[#allocation11 + $0x30] sm:$0xf]
    %v1509 = vld [vmem:[#allocation11 + $0x34] sm:$0xf]
    %v1510 = vld [vmem:[#allocation11 + $0x38] sm:$0xf]
    %v1511 = vld [vmem:[#allocation11 + $0x3c] sm:$0xf]
    %v1512 = vlaneseq
    %v1513 = vshrl.u32 %v1512, 7
    %v1514 = vsub.s32 4, %v1513
    %v1515 = vrot.slane %v124, %v1514
    %v1532 = vunpack.c.l.b16 %v1496
    %v1533 = vunpack.c.l.b16 %v1497
    %v1534 = vunpack.c.l.b16 %v1498
    %v1535 = vunpack.c.l.b16 %v1499
    %v1536 = vunpack.c.l.b16 %v1500
    %v1537 = vunpack.c.l.b16 %v1501
    %v1538 = vunpack.c.l.b16 %v1502
    %v1539 = vunpack.c.l.b16 %v1503
    %v1540 = vunpack.c.l.b16 %v1504
    %v1541 = vunpack.c.l.b16 %v1505
    %v1542 = vunpack.c.l.b16 %v1506
    %v1543 = vunpack.c.l.b16 %v1507
    %v1544 = vunpack.c.l.b16 %v1508
    %v1545 = vunpack.c.l.b16 %v1509
    %v1546 = vunpack.c.l.b16 %v1510
    %v1547 = vunpack.c.l.b16 %v1511
    %v1548 = vpack.c.b16 %v1533, %v1532
    %v1549 = vpack.c.b16 %v1535, %v1534
    %v1550 = vpack.c.b16 %v1537, %v1536
    %v1551 = vpack.c.b16 %v1539, %v1538
    %v1552 = vpack.c.b16 %v1541, %v1540
    %v1553 = vpack.c.b16 %v1543, %v1542
    %v1554 = vpack.c.b16 %v1545, %v1544
    %v1555 = vpack.c.b16 %v1547, %v1546
    %1564 = vmatprep.subr.bf16.mxu0 0
    %1565 = vmatpush1.bf16.msra.mxu0 %v1548
    %1566 = vmatprep.subr.bf16.mxu0 0
    %1567 = vmatpush1.bf16.msra.mxu0 %v1549
    %1568 = vmatprep.subr.bf16.mxu0 0
    %1569 = vmatpush1.bf16.msra.mxu0 %v1550
    %1570 = vmatprep.subr.bf16.mxu0 0
    %1571 = vmatpush1.bf16.msra.mxu0 %v1551
    %1572 = vmatprep.subr.bf16.mxu0 0
    %1573 = vmatpush1.bf16.msra.mxu0 %v1552
    %1574 = vmatprep.subr.bf16.mxu0 0
    %1575 = vmatpush1.bf16.msra.mxu0 %v1553
    %1576 = vmatprep.subr.bf16.mxu0 0
    %1577 = vmatpush1.bf16.msra.mxu0 %v1554
    %1578 = vmatprep.subr.bf16.mxu0 0
    %1579 = vmatpush1.bf16.msra.mxu0 %v1555
    %1580 = vmatprep.subr.bf16.mxu0 0
    %1581 = vmatpush1.bf16.msra.mxu0 0
    %1582 = vmatprep.subr.bf16.mxu0 0
    %1583 = vmatpush1.bf16.msra.mxu0 0
    %1584 = vmatprep.subr.bf16.mxu0 0
    %1585 = vmatpush1.bf16.msra.mxu0 0
    %1586 = vmatprep.subr.bf16.mxu0 0
    %1587 = vmatpush1.bf16.msra.mxu0 0
    %1588 = vmatprep.subr.bf16.mxu0 0
    %1589 = vmatpush1.bf16.msra.mxu0 0
    %1590 = vmatprep.subr.bf16.mxu0 0
    %1591 = vmatpush1.bf16.msra.mxu0 0
    %1592 = vmatprep.subr.bf16.mxu0 0
    %1593 = vmatpush1.bf16.msra.mxu0 0
    %1594 = vmatprep.subr.bf16.mxu0 0
    %1595 = vmatpush1.bf16.msra.mxu0 0
    %1596 = vmatprep.mubr.bf16.mxu0 0
    %1597 = vmatmul.mubr.bf16.gmra.mrb[0].mxu0 %v1495
    %v1598 = vpop.f32.mrb[0].mxu0
    %v1599 = vadd.f32 %v1515, %v1598
    %v1600 = vpop.f32.mrb[0].mxu0
    %v1601 = vpop.f32.mrb[0].mxu0
    %v1602 = vpop.f32.mrb[0].mxu0
    %1603 = vdwg.mxu0
    %v1604 = vmax.f32 %v1599, 0.0
    %v1605 = vpack.c.bf16 %v1604, %v1604
    %v1606 = vld [vmem:[#allocation13] sm:$0xf]
    %v1607 = vld [vmem:[#allocation13 + $0x4] sm:$0xf]
    %v1608 = vld [vmem:[#allocation13 + $0x8] sm:$0xf]
    %v1609 = vld [vmem:[#allocation13 + $0xc] sm:$0xf]
    %v1610 = vld [vmem:[#allocation13 + $0x10] sm:$0xf]
    %v1611 = vld [vmem:[#allocation13 + $0x14] sm:$0xf]
    %v1612 = vld [vmem:[#allocation13 + $0x18] sm:$0xf]
    %v1613 = vld [vmem:[#allocation13 + $0x1c] sm:$0xf]
    %v1614 = vld [vmem:[#allocation13 + $0x20] sm:$0xf]
    %v1615 = vld [vmem:[#allocation13 + $0x24] sm:$0xf]
    %v1616 = vld [vmem:[#allocation13 + $0x28] sm:$0xf]
    %v1617 = vld [vmem:[#allocation13 + $0x2c] sm:$0xf]
    %v1618 = vld [vmem:[#allocation13 + $0x30] sm:$0xf]
    %v1619 = vld [vmem:[#allocation13 + $0x34] sm:$0xf]
    %v1620 = vld [vmem:[#allocation13 + $0x38] sm:$0xf]
    %v1621 = vld [vmem:[#allocation13 + $0x3c] sm:$0xf]
    %v1622 = vlaneseq
    %v1623 = vshrl.u32 %v1622, 7
    %v1624 = vsub.s32 5, %v1623
    %v1625 = vrot.slane %v124, %v1624
    %v1642 = vunpack.c.l.b16 %v1606
    %v1643 = vunpack.c.l.b16 %v1607
    %v1644 = vunpack.c.l.b16 %v1608
    %v1645 = vunpack.c.l.b16 %v1609
    %v1646 = vunpack.c.l.b16 %v1610
    %v1647 = vunpack.c.l.b16 %v1611
    %v1648 = vunpack.c.l.b16 %v1612
    %v1649 = vunpack.c.l.b16 %v1613
    %v1650 = vunpack.c.l.b16 %v1614
    %v1651 = vunpack.c.l.b16 %v1615
    %v1652 = vunpack.c.l.b16 %v1616
    %v1653 = vunpack.c.l.b16 %v1617
    %v1654 = vunpack.c.l.b16 %v1618
    %v1655 = vunpack.c.l.b16 %v1619
    %v1656 = vunpack.c.l.b16 %v1620
    %v1657 = vunpack.c.l.b16 %v1621
    %v1658 = vpack.c.b16 %v1643, %v1642
    %v1659 = vpack.c.b16 %v1645, %v1644
    %v1660 = vpack.c.b16 %v1647, %v1646
    %v1661 = vpack.c.b16 %v1649, %v1648
    %v1662 = vpack.c.b16 %v1651, %v1650
    %v1663 = vpack.c.b16 %v1653, %v1652
    %v1664 = vpack.c.b16 %v1655, %v1654
    %v1665 = vpack.c.b16 %v1657, %v1656
    %1674 = vmatprep.subr.bf16.mxu0 0
    %1675 = vmatpush1.bf16.msra.mxu0 %v1658
    %1676 = vmatprep.subr.bf16.mxu0 0
    %1677 = vmatpush1.bf16.msra.mxu0 %v1659
    %1678 = vmatprep.subr.bf16.mxu0 0
    %1679 = vmatpush1.bf16.msra.mxu0 %v1660
    %1680 = vmatprep.subr.bf16.mxu0 0
    %1681 = vmatpush1.bf16.msra.mxu0 %v1661
    %1682 = vmatprep.subr.bf16.mxu0 0
    %1683 = vmatpush1.bf16.msra.mxu0 %v1662
    %1684 = vmatprep.subr.bf16.mxu0 0
    %1685 = vmatpush1.bf16.msra.mxu0 %v1663
    %1686 = vmatprep.subr.bf16.mxu0 0
    %1687 = vmatpush1.bf16.msra.mxu0 %v1664
    %1688 = vmatprep.subr.bf16.mxu0 0
    %1689 = vmatpush1.bf16.msra.mxu0 %v1665
    %1690 = vmatprep.subr.bf16.mxu0 0
    %1691 = vmatpush1.bf16.msra.mxu0 0
    %1692 = vmatprep.subr.bf16.mxu0 0
    %1693 = vmatpush1.bf16.msra.mxu0 0
    %1694 = vmatprep.subr.bf16.mxu0 0
    %1695 = vmatpush1.bf16.msra.mxu0 0
    %1696 = vmatprep.subr.bf16.mxu0 0
    %1697 = vmatpush1.bf16.msra.mxu0 0
    %1698 = vmatprep.subr.bf16.mxu0 0
    %1699 = vmatpush1.bf16.msra.mxu0 0
    %1700 = vmatprep.subr.bf16.mxu0 0
    %1701 = vmatpush1.bf16.msra.mxu0 0
    %1702 = vmatprep.subr.bf16.mxu0 0
    %1703 = vmatpush1.bf16.msra.mxu0 0
    %1704 = vmatprep.subr.bf16.mxu0 0
    %1705 = vmatpush1.bf16.msra.mxu0 0
    %1706 = vmatprep.mubr.bf16.mxu0 0
    %1707 = vmatmul.mubr.bf16.gmra.mrb[0].mxu0 %v1605
    %v1708 = vpop.f32.mrb[0].mxu0
    %v1709 = vadd.f32 %v1625, %v1708
    %v1710 = vpop.f32.mrb[0].mxu0
    %v1711 = vpop.f32.mrb[0].mxu0
    %v1712 = vpop.f32.mrb[0].mxu0
    %1713 = vdwg.mxu0
    %1714 = vst [vmem:[#allocation14] sm:$0xff] %v1709
    // Predicated region
    $region62: #{tpu_custom_call.1} parent=1 // pred_check
      _
    $region63: #{tpu_custom_call.1} parent=1 // pred_check_branch
      %1716 = sbr.rel (0) target = $region65
    $region64: #{tpu_custom_call.1} parent=1 // pred_region
      %s1718 = ssub.s32 128, 128
      %1719 = vsyncadd [#allocation4], %s1718
      %s1721 = sshll.u32 [#allocation14], 4
      %s1722 = int_to_ptr.vmem [resolvable:$true] %s1721
      %1724 = dma.vmem_to_hbm [thread:$0]  %s1722, 128, %s8, [#allocation4]
    $region65: #{tpu_custom_call.1} parent=1 // pred_fallthru
      _
    // Predicated region
    $region66: #{tpu_custom_call.1} parent=1 // pred_check
      _
    $region67: #{tpu_custom_call.1} parent=1 // pred_check_branch
      %1726 = sbr.rel (0) target = $region69
    $region68: #{tpu_custom_call.1} parent=1 // pred_region
      %1727 = dma.done [#allocation4], 128
    $region69: #{tpu_custom_call.1} parent=1 // pred_fallthru
      _
    %1728 = vsyncpa [#allocation3], 1
    %1729 = vsyncpa [#allocation6], 1
    %1730 = vsyncpa [#allocation9], 1
    %1731 = vsyncpa [#allocation12], 1
    %1732 = vsyncpa [#allocation4], 1

</llo_original>
